<compile_context>
chip_gen: v6e
topology: v6e:2x2x1
jax: 0.10.0
libtpu: 0.0.40
codegen_flags: <defaults>
</compile_context>

<pallas_src>
import math

import jax
import jax.numpy as jnp
from jax import lax
from jax.experimental import pallas as pl
from jax.experimental.pallas import tpu as pltpu


def _gelu_exact(x):
    # PyTorch nn.GELU default (approximate='none'): 0.5*x*(1+erf(x/sqrt(2)))
    return 0.5 * x * (1.0 + lax.erf(x * (1.0 / math.sqrt(2.0))))


def _round_up(x, m):
    return (x + m - 1) // m * m


# ---------------------------------------------------------------------------
# Kernel
# ---------------------------------------------------------------------------
def mlp_kernel(x_ref, w1_ref, b1_ref, w2_ref, b2_ref, le_w_ref, eca_w_ref, o_ref):
    """One block of batch elements per grid step.

    x_ref : (BB, N, Cin)   VMEM (bf16)
    w1_ref: (Cin, Hp)      VMEM (bf16)    b1_ref: (1, Hp)    VMEM (f32)
    w2_ref: (Hp, Coutp)    VMEM (bf16)    b2_ref: (1, Coutp) VMEM (f32)
    le_w_ref : (3,)        SMEM (PartialConv_1d 3-tap weight, channel 0 only)
    eca_w_ref: (3,)        SMEM (eca 3-tap weight over output channels)
    o_ref : (BB, N, Coutp) VMEM
    """
    BB, N, Cin = x_ref.shape
    Hp = w1_ref.shape[1]
    Coutp = w2_ref.shape[1]
    M = BB * N

    # ---- fc1 (+bias) + GELU; batch*seq folded into the MXU M dimension ----
    xb = x_ref[...].reshape(M, Cin)                              # bf16
    h = jnp.dot(xb, w1_ref[...], preferred_element_type=jnp.float32) + b1_ref[...]
    h = _gelu_exact(h)                                           # (M, Hp) f32

    # ---- local enhance: conv1d(k=3, pad=1, no bias) on hidden-channel 0,
    # along the sequence axis of each batch element.  Shifts go through the
    # XLU (pltpu.roll); tiny row masks zero the wrapped rows so each batch
    # element sees zero padding at its sequence boundaries. ----
    W = min(Hp, 128)
    hs3 = h[:, :W].reshape(BB, N, W)                             # (BB, N, W)
    row = lax.broadcasted_iota(jnp.int32, (1, N, 1), 1)
    m_prev = (row != 0).astype(jnp.float32)                      # zero row 0 of h[n-1]
    m_next = (row != N - 1).astype(jnp.float32)                  # zero row N-1 of h[n+1]
    h_prev = pltpu.roll(hs3, shift=1, axis=1) * m_prev           # h[n-1]
    h_next = pltpu.roll(hs3, shift=N - 1, axis=1) * m_next       # h[n+1]
    conv = le_w_ref[0] * h_prev + le_w_ref[1] * hs3 + le_w_ref[2] * h_next
    lane = lax.broadcasted_iota(jnp.int32, (1, 1, W), 2)
    mask0 = (lane == 0).astype(jnp.float32)                      # select channel 0 only
    hs_new = (hs3 + mask0 * (conv - hs3)).reshape(M, W)
    if W < Hp:
        h = jnp.concatenate([hs_new, h[:, W:]], axis=1)
    else:
        h = hs_new
    h = _gelu_exact(h)                                           # act after leconv

    # ---- fc2 (+bias) ----
    out = jnp.dot(h.astype(jnp.bfloat16), w2_ref[...],
                  preferred_element_type=jnp.float32) + b2_ref[...]
    out3 = out.reshape(BB, N, Coutp)                             # (BB, N, Coutp)

    # ---- eca_layer_1d: mean over seq -> conv1d(k=3,pad=1) over channels ->
    # sigmoid -> scale.  The channel conv only touches a (BB, Coutp) row. ----
    ybar = jnp.mean(out3, axis=1)                                # (BB, Coutp)
    ch = lax.broadcasted_iota(jnp.int32, (1, Coutp), 1)
    cm_prev = (ch != 0).astype(jnp.float32)
    cm_next = (ch != Coutp - 1).astype(jnp.float32)
    y_prev = pltpu.roll(ybar, shift=1, axis=1) * cm_prev         # y[c-1]
    y_next = pltpu.roll(ybar, shift=Coutp - 1, axis=1) * cm_next # y[c+1]
    z = jax.nn.sigmoid(eca_w_ref[0] * y_prev + eca_w_ref[1] * ybar
                       + eca_w_ref[2] * y_next)                  # (BB, Coutp)

    o_ref[...] = (out3 * z[:, None, :]).astype(o_ref.dtype)


# ---------------------------------------------------------------------------
# One-time parameter preparation (hoisted casts + lane padding)
# ---------------------------------------------------------------------------
def prepare_mlp_params(w1, b1, w2, b2, le_w, eca_w, *, lane=128):
    """Cast weights to bf16 once and zero-pad H / Cout to lane multiples.

    Zero padding is semantics-preserving: padded hidden channels stay exactly
    zero through gelu and contribute nothing through zero-padded w2 rows;
    padded output channels are exactly zero and their eca neighbor value
    equals the reference's zero padding.
    """
    Cin, H = w1.shape
    Cout = w2.shape[1]
    Hp = _round_up(H, lane)
    Coutp = _round_up(Cout, lane)

    w1p = jnp.zeros((Cin, Hp), jnp.bfloat16).at[:, :H].set(w1.astype(jnp.bfloat16))
    b1p = jnp.zeros((1, Hp), jnp.float32).at[:, :H].set(
        b1.reshape(1, H).astype(jnp.float32))
    w2p = jnp.zeros((Hp, Coutp), jnp.bfloat16).at[:H, :Cout].set(w2.astype(jnp.bfloat16))
    b2p = jnp.zeros((1, Coutp), jnp.float32).at[:, :Cout].set(
        b2.reshape(1, Cout).astype(jnp.float32))
    return dict(
        w1=w1p, b1=b1p, w2=w2p, b2=b2p,
        le_w=le_w.reshape(3).astype(jnp.float32),
        eca_w=eca_w.reshape(3).astype(jnp.float32),
        out_features=Cout,
    )


# ---------------------------------------------------------------------------
# Tile sizing helpers (per-generation VMEM budget)
# ---------------------------------------------------------------------------
def _vmem_capacity_bytes():
    try:
        return int(pltpu.get_tpu_info().vmem_capacity_bytes)
    except Exception:
        return 64 * 1024 * 1024            # conservative (v7x per-TC)


def _vmem_estimate_bytes(bb, N, Cin, Hp, Coutp, out_itemsize):
    M = bb * N
    x_blk = 2 * M * Cin * 2                             # double-buffered bf16 input
    o_blk = 2 * M * Coutp * out_itemsize                # double-buffered output
    wgt = (Cin * Hp + Hp * Coutp) * 2 + (Hp + Coutp) * 4   # single-buffered params
    # live f32 temporaries: h (x2 passes), rolled/conv slabs, fc2 output
    tmp = 2 * M * Hp * 4 + 3 * M * min(Hp, 128) * 4 + M * Coutp * 4
    return x_blk + o_blk + wgt + tmp


def _pick_batch_block(B, N, Cin, Hp, Coutp, out_itemsize, budget,
                      *, target_rows=512, min_steps=4):
    """Pick batch_block so the grid has multiple steps (pipelining / megacore)
    while keeping >= ~target_rows MXU rows per step and fitting the VMEM budget."""
    divisors = [d for d in range(1, B + 1) if B % d == 0]
    good = [d for d in divisors if B // d >= min(min_steps, B)] or [min(divisors)]
    cand = [d for d in good if d * N >= target_rows]
    bb = min(cand) if cand else max(good)
    while bb > 1 and _vmem_estimate_bytes(bb, N, Cin, Hp, Coutp, out_itemsize) > budget:
        bb = max(d for d in divisors if d < bb)
    return bb


# ---------------------------------------------------------------------------
# Wrapper
# ---------------------------------------------------------------------------
def mlp_pallas(x, params, *, batch_block=None, out_dtype=None):
    B, N, Cin = x.shape
    w1, b1, w2, b2 = params["w1"], params["b1"], params["w2"], params["b2"]
    le_w, eca_w = params["le_w"], params["eca_w"]
    Cout = params["out_features"]
    Hp, Coutp = w1.shape[1], w2.shape[1]
    assert w1.shape[0] == Cin

    if out_dtype is None:
        out_dtype = x.dtype
    out_itemsize = jnp.dtype(out_dtype).itemsize

    capacity = _vmem_capacity_bytes()
    budget = int(capacity * 0.6)            # headroom under the physical limit

    if batch_block is None:
        batch_block = _pick_batch_block(B, N, Cin, Hp, Coutp, out_itemsize, budget)
    assert B % batch_block == 0
    grid = (B // batch_block,)

    est = _vmem_estimate_bytes(batch_block, N, Cin, Hp, Coutp, out_itemsize)
    vmem_limit = max(32 << 20, min(int(capacity * 0.75), int(est * 1.5) + (8 << 20)))

    # Stream x in bf16 (ideally the caller already passes bf16 so this is a no-op).
    xb = x if x.dtype == jnp.bfloat16 else x.astype(jnp.bfloat16)

    def build_call(single_buffer_weights):
        if single_buffer_weights:
            def wspec(shape):
                return pl.BlockSpec(shape, lambda b: (0, 0),
                                    pipeline_mode=pl.Buffered(1))
        else:
            def wspec(shape):
                return pl.BlockSpec(shape, lambda b: (0, 0))
        return pl.pallas_call(
            mlp_kernel,
            out_shape=jax.ShapeDtypeStruct((B, N, Coutp), out_dtype),
            grid=grid,
            in_specs=[
                pl.BlockSpec((batch_block, N, Cin), lambda b: (b, 0, 0)),
                wspec((Cin, Hp)),
                wspec((1, Hp)),
                wspec((Hp, Coutp)),
                wspec((1, Coutp)),
                pl.BlockSpec(memory_space=pltpu.MemorySpace.SMEM),
                pl.BlockSpec(memory_space=pltpu.MemorySpace.SMEM),
            ],
            out_specs=pl.BlockSpec((batch_block, N, Coutp), lambda b: (b, 0, 0)),
            compiler_params=pltpu.CompilerParams(
                dimension_semantics=("parallel",),
                vmem_limit_bytes=vmem_limit,
            ),
        )

    try:
        out_p = build_call(True)(xb, w1, b1, w2, b2, le_w, eca_w)
    except Exception:
        # Fallback if this Pallas version rejects single-buffered (Buffered(1)) specs.
        out_p = build_call(False)(xb, w1, b1, w2, b2, le_w, eca_w)

    return out_p[..., :Cout] if Coutp != Cout else out_p


# ---------------------------------------------------------------------------
# Pure-JAX f32 reference matching the PyTorch forward (local_enhance + eca)
# ---------------------------------------------------------------------------
def mlp_reference(x, w1, b1, w2, b2, le_w, eca_w):
    h = x @ w1 + b1
    h = _gelu_exact(h)
    # PartialConv_1d on hidden channel 0, along seq (zero padded, k=3)
    ch0 = h[..., 0]                                               # (B, N)
    prev = jnp.pad(ch0, ((0, 0), (1, 0)))[:, :-1]
    nxt = jnp.pad(ch0, ((0, 0), (0, 1)))[:, 1:]
    ch0c = le_w[0] * prev + le_w[1] * ch0 + le_w[2] * nxt
    h = h.at[..., 0].set(ch0c)
    h = _gelu_exact(h)
    out = h @ w2 + b2                                             # (B, N, Cout)
    # eca: mean over seq, conv1d(k=3,pad=1) over channels, sigmoid, scale
    ybar = out.mean(axis=1)                                       # (B, Cout)
    p = jnp.pad(ybar, ((0, 0), (1, 0)))[:, :-1]
    n = jnp.pad(ybar, ((0, 0), (0, 1)))[:, 1:]
    z = jax.nn.sigmoid(eca_w[0] * p + eca_w[1] * ybar + eca_w[2] * n)
    return out * z[:, None, :]


if __name__ == "__main__":
    B, N = 2, 8
    in_features = 32
    hidden_features = 64
    out_features = in_features  # default: out_features = in_features

    key = jax.random.PRNGKey(0)
    kx, k1, kb1, k2, kb2, kle, keca = jax.random.split(key, 7)

    x = jax.random.normal(kx, (B, N, in_features), dtype=jnp.float32)
    # Deterministic synthetic parameters (shapes per the module __init__).
    w1 = jax.random.normal(k1, (in_features, hidden_features), jnp.float32) * 0.05
    b1 = jax.random.normal(kb1, (1, hidden_features), jnp.float32) * 0.05
    w2 = jax.random.normal(k2, (hidden_features, out_features), jnp.float32) * 0.05
    b2 = jax.random.normal(kb2, (1, out_features), jnp.float32) * 0.05
    le_w = jax.random.normal(kle, (3,), jnp.float32) * 0.3    # Conv1d(1,1,3) of PartialConv_1d
    eca_w = jax.random.normal(keca, (3,), jnp.float32) * 0.3  # Conv1d(1,1,3) of eca_layer_1d

    # One-time parameter prep (bf16 casts + lane padding hoisted out of the forward).
    params = prepare_mlp_params(w1, b1, w2, b2, le_w, eca_w)

    # The kernel accepts bf16 activations (halved HBM streaming); output kept f32.
    out = mlp_pallas(x.astype(jnp.bfloat16), params, out_dtype=jnp.float32)
    out = jax.block_until_ready(out)

    ref = mlp_reference(x, w1, b1, w2, b2, le_w, eca_w)
    assert out.shape == (B, N, out_features)
    # bf16 MXU operands vs. f32 reference -> relative error ~1e-2.
    assert jnp.allclose(out, ref, rtol=1e-2, atol=1e-2), (
        f"max abs err {jnp.max(jnp.abs(out - ref))}")

    print("KERNEL_OK")
</pallas_src>

<mosaic_0001>
module attributes {stable_mosaic.version = 11 : i64} {
  func.func @mlp_kernel(%arg0: i32, %arg1: memref<1x8x32xbf16, #tpu.memory_space<vmem>>, %arg2: memref<32x128xbf16, #tpu.memory_space<vmem>>, %arg3: memref<1x128xf32, #tpu.memory_space<vmem>>, %arg4: memref<128x128xbf16, #tpu.memory_space<vmem>>, %arg5: memref<1x128xf32, #tpu.memory_space<vmem>>, %arg6: memref<3xf32, #tpu.memory_space<smem>>, %arg7: memref<3xf32, #tpu.memory_space<smem>>, %arg8: memref<1x8x128xf32, #tpu.memory_space<vmem>>) attributes {dimension_semantics = [#tpu.dimension_semantics<parallel>], iteration_bounds = array<i64: 2>, scalar_prefetch = 0 : i64, scratch_operands = 0 : i64, tpu.core_type = #tpu.core_type<tc>, window_params = [{transform_indices = @transform_0, window_bounds = array<i64: 1, 8, 32>}, {pipeline_mode = #tpu.pipeline_mode<synchronous>, transform_indices = @transform_1, window_bounds = array<i64: 32, 128>}, {pipeline_mode = #tpu.pipeline_mode<synchronous>, transform_indices = @transform_2, window_bounds = array<i64: 1, 128>}, {pipeline_mode = #tpu.pipeline_mode<synchronous>, transform_indices = @transform_3, window_bounds = array<i64: 128, 128>}, {pipeline_mode = #tpu.pipeline_mode<synchronous>, transform_indices = @transform_4, window_bounds = array<i64: 1, 128>}, {transform_indices = @transform_5, window_bounds = array<i64: 3>}, {transform_indices = @transform_6, window_bounds = array<i64: 3>}, {transform_indices = @transform_7, window_bounds = array<i64: 1, 8, 128>}]} {
    %c0 = arith.constant 0 : index
    %c0_0 = arith.constant 0 : index
    %c0_1 = arith.constant 0 : index
    %0 = vector.load %arg1[%c0, %c0_0, %c0_1] : memref<1x8x32xbf16, #tpu.memory_space<vmem>>, vector<1x8x32xbf16>
    %1 = vector.shape_cast %0 : vector<1x8x32xbf16> to vector<8x32xbf16>
    %c0_2 = arith.constant 0 : index
    %c0_3 = arith.constant 0 : index
    %2 = vector.load %arg2[%c0_2, %c0_3] : memref<32x128xbf16, #tpu.memory_space<vmem>>, vector<32x128xbf16>
    %cst = arith.constant dense<0.000000e+00> : vector<8x128xf32>
    %3 = tpu.matmul %1, %2, %cst {dimension_numbers = #tpu.dot_dimension_numbers<[1], [0], [0], [1], [0, 0, 1, 1], [], []>} : vector<8x32xbf16>, vector<32x128xbf16>, vector<8x128xf32> -> vector<8x128xf32>
    %c0_4 = arith.constant 0 : index
    %c0_5 = arith.constant 0 : index
    %4 = vector.load %arg3[%c0_4, %c0_5] : memref<1x128xf32, #tpu.memory_space<vmem>>, vector<1x128xf32>
    %5 = vector.broadcast %4 : vector<1x128xf32> to vector<8x128xf32>
    %6 = arith.addf %3, %5 : vector<8x128xf32>
    %cst_6 = arith.constant 5.000000e-01 : f32
    %7 = vector.broadcast %cst_6 : f32 to vector<8x128xf32>
    %8 = arith.mulf %7, %6 : vector<8x128xf32>
    %cst_7 = arith.constant 0.707106769 : f32
    %9 = vector.broadcast %cst_7 : f32 to vector<8x128xf32>
    %10 = arith.mulf %6, %9 : vector<8x128xf32>
    %11 = math.erf %10 : vector<8x128xf32>
    %cst_8 = arith.constant 1.000000e+00 : f32
    %12 = vector.broadcast %cst_8 : f32 to vector<8x128xf32>
    %13 = arith.addf %12, %11 : vector<8x128xf32>
    %14 = arith.mulf %8, %13 : vector<8x128xf32>
    %15 = vector.shape_cast %14 : vector<8x128xf32> to vector<1x8x128xf32>
    %16 = tpu.iota {dimensions = array<i32: 1>} : vector<1x8x1xi32>
    %c0_i32 = arith.constant 0 : i32
    %17 = vector.broadcast %c0_i32 : i32 to vector<1x8x1xi32>
    %18 = arith.cmpi ne, %16, %17 : vector<1x8x1xi32>
    %19 = arith.extui %18 : vector<1x8x1xi1> to vector<1x8x1xi32>
    %20 = arith.sitofp %19 : vector<1x8x1xi32> to vector<1x8x1xf32>
    %c7_i32 = arith.constant 7 : i32
    %21 = vector.broadcast %c7_i32 : i32 to vector<1x8x1xi32>
    %22 = arith.cmpi ne, %16, %21 : vector<1x8x1xi32>
    %23 = arith.extui %22 : vector<1x8x1xi1> to vector<1x8x1xi32>
    %24 = arith.sitofp %23 : vector<1x8x1xi32> to vector<1x8x1xf32>
    %c1_i32 = arith.constant 1 : i32
    %25 = tpu.dynamic_rotate %15 by %c1_i32 dim 1 : vector<1x8x128xf32>, i32 -> vector<1x8x128xf32>
    %26 = vector.broadcast %20 : vector<1x8x1xf32> to vector<1x8x128xf32>
    %27 = arith.mulf %25, %26 : vector<1x8x128xf32>
    %c7_i32_9 = arith.constant 7 : i32
    %28 = tpu.dynamic_rotate %15 by %c7_i32_9 dim 1 : vector<1x8x128xf32>, i32 -> vector<1x8x128xf32>
    %29 = vector.broadcast %24 : vector<1x8x1xf32> to vector<1x8x128xf32>
    %30 = arith.mulf %28, %29 : vector<1x8x128xf32>
    %c0_10 = arith.constant 0 : index
    %31 = memref.load %arg6[%c0_10] : memref<3xf32, #tpu.memory_space<smem>>
    %32 = vector.broadcast %31 : f32 to vector<1x8x128xf32>
    %33 = arith.mulf %32, %27 : vector<1x8x128xf32>
    %c1 = arith.constant 1 : index
    %34 = memref.load %arg6[%c1] : memref<3xf32, #tpu.memory_space<smem>>
    %35 = vector.broadcast %34 : f32 to vector<1x8x128xf32>
    %36 = arith.mulf %35, %15 : vector<1x8x128xf32>
    %37 = arith.addf %33, %36 : vector<1x8x128xf32>
    %c2 = arith.constant 2 : index
    %38 = memref.load %arg6[%c2] : memref<3xf32, #tpu.memory_space<smem>>
    %39 = vector.broadcast %38 : f32 to vector<1x8x128xf32>
    %40 = arith.mulf %39, %30 : vector<1x8x128xf32>
    %41 = arith.addf %37, %40 : vector<1x8x128xf32>
    %42 = tpu.iota {dimensions = array<i32: 2>} : vector<1x1x128xi32>
    %c0_i32_11 = arith.constant 0 : i32
    %43 = vector.broadcast %c0_i32_11 : i32 to vector<1x1x128xi32>
    %44 = arith.cmpi eq, %42, %43 : vector<1x1x128xi32>
    %45 = arith.extui %44 : vector<1x1x128xi1> to vector<1x1x128xi32>
    %46 = arith.sitofp %45 : vector<1x1x128xi32> to vector<1x1x128xf32>
    %47 = arith.subf %41, %15 : vector<1x8x128xf32>
    %48 = vector.broadcast %46 : vector<1x1x128xf32> to vector<1x8x128xf32>
    %49 = arith.mulf %48, %47 : vector<1x8x128xf32>
    %50 = arith.addf %15, %49 : vector<1x8x128xf32>
    %51 = vector.shape_cast %50 : vector<1x8x128xf32> to vector<8x128xf32>
    %cst_12 = arith.constant 5.000000e-01 : f32
    %52 = vector.broadcast %cst_12 : f32 to vector<8x128xf32>
    %53 = arith.mulf %52, %51 : vector<8x128xf32>
    %cst_13 = arith.constant 0.707106769 : f32
    %54 = vector.broadcast %cst_13 : f32 to vector<8x128xf32>
    %55 = arith.mulf %51, %54 : vector<8x128xf32>
    %56 = math.erf %55 : vector<8x128xf32>
    %cst_14 = arith.constant 1.000000e+00 : f32
    %57 = vector.broadcast %cst_14 : f32 to vector<8x128xf32>
    %58 = arith.addf %57, %56 : vector<8x128xf32>
    %59 = arith.mulf %53, %58 : vector<8x128xf32>
    %60 = arith.truncf %59 : vector<8x128xf32> to vector<8x128xbf16>
    %c0_15 = arith.constant 0 : index
    %c0_16 = arith.constant 0 : index
    %61 = vector.load %arg4[%c0_15, %c0_16] : memref<128x128xbf16, #tpu.memory_space<vmem>>, vector<128x128xbf16>
    %cst_17 = arith.constant dense<0.000000e+00> : vector<8x128xf32>
    %62 = tpu.matmul %60, %61, %cst_17 {dimension_numbers = #tpu.dot_dimension_numbers<[1], [0], [0], [1], [0, 0, 1, 1], [], []>} : vector<8x128xbf16>, vector<128x128xbf16>, vector<8x128xf32> -> vector<8x128xf32>
    %c0_18 = arith.constant 0 : index
    %c0_19 = arith.constant 0 : index
    %63 = vector.load %arg5[%c0_18, %c0_19] : memref<1x128xf32, #tpu.memory_space<vmem>>, vector<1x128xf32>
    %64 = vector.broadcast %63 : vector<1x128xf32> to vector<8x128xf32>
    %65 = arith.addf %62, %64 : vector<8x128xf32>
    %66 = vector.shape_cast %65 : vector<8x128xf32> to vector<1x8x128xf32>
    %cst_20 = arith.constant dense<0.000000e+00> : vector<1x128xf32>
    %67 = vector.multi_reduction <add>, %66, %cst_20 [1] : vector<1x8x128xf32> to vector<1x128xf32>
    %cst_21 = arith.constant 8.000000e+00 : f32
    %68 = vector.broadcast %cst_21 : f32 to vector<1x128xf32>
    %69 = arith.divf %67, %68 : vector<1x128xf32>
    %70 = tpu.iota {dimensions = array<i32: 1>} : vector<1x128xi32>
    %c0_i32_22 = arith.constant 0 : i32
    %71 = vector.broadcast %c0_i32_22 : i32 to vector<1x128xi32>
    %72 = arith.cmpi ne, %70, %71 : vector<1x128xi32>
    %73 = arith.extui %72 : vector<1x128xi1> to vector<1x128xi32>
    %74 = arith.sitofp %73 : vector<1x128xi32> to vector<1x128xf32>
    %c127_i32 = arith.constant 127 : i32
    %75 = vector.broadcast %c127_i32 : i32 to vector<1x128xi32>
    %76 = arith.cmpi ne, %70, %75 : vector<1x128xi32>
    %77 = arith.extui %76 : vector<1x128xi1> to vector<1x128xi32>
    %78 = arith.sitofp %77 : vector<1x128xi32> to vector<1x128xf32>
    %c1_i32_23 = arith.constant 1 : i32
    %79 = tpu.dynamic_rotate %69 by %c1_i32_23 dim 1 : vector<1x128xf32>, i32 -> vector<1x128xf32>
    %80 = arith.mulf %79, %74 : vector<1x128xf32>
    %c127_i32_24 = arith.constant 127 : i32
    %81 = tpu.dynamic_rotate %69 by %c127_i32_24 dim 1 : vector<1x128xf32>, i32 -> vector<1x128xf32>
    %82 = arith.mulf %81, %78 : vector<1x128xf32>
    %c0_25 = arith.constant 0 : index
    %83 = memref.load %arg7[%c0_25] : memref<3xf32, #tpu.memory_space<smem>>
    %84 = vector.broadcast %83 : f32 to vector<1x128xf32>
    %85 = arith.mulf %84, %80 : vector<1x128xf32>
    %c1_26 = arith.constant 1 : index
    %86 = memref.load %arg7[%c1_26] : memref<3xf32, #tpu.memory_space<smem>>
    %87 = vector.broadcast %86 : f32 to vector<1x128xf32>
    %88 = arith.mulf %87, %69 : vector<1x128xf32>
    %89 = arith.addf %85, %88 : vector<1x128xf32>
    %c2_27 = arith.constant 2 : index
    %90 = memref.load %arg7[%c2_27] : memref<3xf32, #tpu.memory_space<smem>>
    %91 = vector.broadcast %90 : f32 to vector<1x128xf32>
    %92 = arith.mulf %91, %82 : vector<1x128xf32>
    %93 = arith.addf %89, %92 : vector<1x128xf32>
    %94 = arith.negf %93 : vector<1x128xf32>
    %95 = math.exp %94 : vector<1x128xf32>
    %cst_28 = arith.constant 1.000000e+00 : f32
    %96 = vector.broadcast %cst_28 : f32 to vector<1x128xf32>
    %97 = arith.addf %96, %95 : vector<1x128xf32>
    %98 = arith.divf %96, %97 : vector<1x128xf32>
    %99 = vector.shape_cast %98 : vector<1x128xf32> to vector<1x1x128xf32>
    %100 = vector.broadcast %99 : vector<1x1x128xf32> to vector<1x8x128xf32>
    %101 = arith.mulf %66, %100 : vector<1x8x128xf32>
    %c0_29 = arith.constant 0 : index
    %c0_30 = arith.constant 0 : index
    %c0_31 = arith.constant 0 : index
    %102 = vector.load %arg8[%c0_29, %c0_30, %c0_31] : memref<1x8x128xf32, #tpu.memory_space<vmem>>, vector<1x8x128xf32>
    tpu.vector_store %arg8[%c0_29, %c0_30, %c0_31], %101 {strides = array<i32>} : memref<1x8x128xf32, #tpu.memory_space<vmem>>, vector<1x8x128xf32>,
    return
  }
  func.func @transform_0(%arg0: i32) -> (i32, i32, i32) {
    %c0_i32 = arith.constant 0 : i32
    %c0_i32_0 = arith.constant 0 : i32
    %c0_i32_1 = arith.constant 0 : i32
    return %arg0, %c0_i32, %c0_i32_0 : i32, i32, i32
  }
  func.func @transform_1(%arg0: i32) -> (i32, i32) {
    %c0_i32 = arith.constant 0 : i32
    %c0_i32_0 = arith.constant 0 : i32
    %c0_i32_1 = arith.constant 0 : i32
    return %c0_i32, %c0_i32_0 : i32, i32
  }
  func.func @transform_2(%arg0: i32) -> (i32, i32) {
    %c0_i32 = arith.constant 0 : i32
    %c0_i32_0 = arith.constant 0 : i32
    %c0_i32_1 = arith.constant 0 : i32
    return %c0_i32, %c0_i32_0 : i32, i32
  }
  func.func @transform_3(%arg0: i32) -> (i32, i32) {
    %c0_i32 = arith.constant 0 : i32
    %c0_i32_0 = arith.constant 0 : i32
    %c0_i32_1 = arith.constant 0 : i32
    return %c0_i32, %c0_i32_0 : i32, i32
  }
  func.func @transform_4(%arg0: i32) -> (i32, i32) {
    %c0_i32 = arith.constant 0 : i32
    %c0_i32_0 = arith.constant 0 : i32
    %c0_i32_1 = arith.constant 0 : i32
    return %c0_i32, %c0_i32_0 : i32, i32
  }
  func.func @transform_5(%arg0: i32) -> i32 {
    %c0_i32 = arith.constant 0 : i32
    %c0_i32_0 = arith.constant 0 : i32
    return %c0_i32 : i32
  }
  func.func @transform_6(%arg0: i32) -> i32 {
    %c0_i32 = arith.constant 0 : i32
    %c0_i32_0 = arith.constant 0 : i32
    return %c0_i32 : i32
  }
  func.func @transform_7(%arg0: i32) -> (i32, i32, i32) {
    %c0_i32 = arith.constant 0 : i32
    %c0_i32_0 = arith.constant 0 : i32
    %c0_i32_1 = arith.constant 0 : i32
    return %arg0, %c0_i32, %c0_i32_0 : i32, i32, i32
  }
}

module attributes {stable_mosaic.version = 11 : i64} {
  func.func @mlp_kernel(%arg0: i32, %arg1: memref<1x8x32xbf16, #tpu.memory_space<vmem>>, %arg2: memref<32x128xbf16, #tpu.memory_space<vmem>>, %arg3: memref<1x128xf32, #tpu.memory_space<vmem>>, %arg4: memref<128x128xbf16, #tpu.memory_space<vmem>>, %arg5: memref<1x128xf32, #tpu.memory_space<vmem>>, %arg6: memref<3xf32, #tpu.memory_space<smem>>, %arg7: memref<3xf32, #tpu.memory_space<smem>>, %arg8: memref<1x8x128xf32, #tpu.memory_space<vmem>>) attributes {dimension_semantics = [#tpu.dimension_semantics<parallel>], iteration_bounds = array<i64: 2>, scalar_prefetch = 0 : i64, scratch_operands = 0 : i64, tpu.core_type = #tpu.core_type<tc>, window_params = [{transform_indices = @transform_0, window_bounds = array<i64: 1, 8, 32>}, {pipeline_mode = #tpu.pipeline_mode<synchronous>, transform_indices = @transform_1, window_bounds = array<i64: 32, 128>}, {pipeline_mode = #tpu.pipeline_mode<synchronous>, transform_indices = @transform_2, window_bounds = array<i64: 1, 128>}, {pipeline_mode = #tpu.pipeline_mode<synchronous>, transform_indices = @transform_3, window_bounds = array<i64: 128, 128>}, {pipeline_mode = #tpu.pipeline_mode<synchronous>, transform_indices = @transform_4, window_bounds = array<i64: 1, 128>}, {transform_indices = @transform_5, window_bounds = array<i64: 3>}, {transform_indices = @transform_6, window_bounds = array<i64: 3>}, {transform_indices = @transform_7, window_bounds = array<i64: 1, 8, 128>}]} {
    %c0 = arith.constant 0 : index
    %c0_0 = arith.constant 0 : index
    %c0_1 = arith.constant 0 : index
    %0 = vector.load %arg1[%c0, %c0_0, %c0_1] : memref<1x8x32xbf16, #tpu.memory_space<vmem>>, vector<1x8x32xbf16>
    %1 = vector.shape_cast %0 : vector<1x8x32xbf16> to vector<8x32xbf16>
    %c0_2 = arith.constant 0 : index
    %c0_3 = arith.constant 0 : index
    %2 = vector.load %arg2[%c0_2, %c0_3] : memref<32x128xbf16, #tpu.memory_space<vmem>>, vector<32x128xbf16>
    %cst = arith.constant dense<0.000000e+00> : vector<8x128xf32>
    %3 = tpu.matmul %1, %2, %cst {dimension_numbers = #tpu.dot_dimension_numbers<[1], [0], [0], [1], [0, 0, 1, 1], [], []>} : vector<8x32xbf16>, vector<32x128xbf16>, vector<8x128xf32> -> vector<8x128xf32>
    %c0_4 = arith.constant 0 : index
    %c0_5 = arith.constant 0 : index
    %4 = vector.load %arg3[%c0_4, %c0_5] : memref<1x128xf32, #tpu.memory_space<vmem>>, vector<1x128xf32>
    %5 = vector.broadcast %4 : vector<1x128xf32> to vector<8x128xf32>
    %6 = arith.addf %3, %5 : vector<8x128xf32>
    %cst_6 = arith.constant 5.000000e-01 : f32
    %7 = vector.broadcast %cst_6 : f32 to vector<8x128xf32>
    %8 = arith.mulf %7, %6 : vector<8x128xf32>
    %cst_7 = arith.constant 0.707106769 : f32
    %9 = vector.broadcast %cst_7 : f32 to vector<8x128xf32>
    %10 = arith.mulf %6, %9 : vector<8x128xf32>
    %11 = math.erf %10 : vector<8x128xf32>
    %cst_8 = arith.constant 1.000000e+00 : f32
    %12 = vector.broadcast %cst_8 : f32 to vector<8x128xf32>
    %13 = arith.addf %12, %11 : vector<8x128xf32>
    %14 = arith.mulf %8, %13 : vector<8x128xf32>
    %15 = vector.shape_cast %14 : vector<8x128xf32> to vector<1x8x128xf32>
    %16 = tpu.iota {dimensions = array<i32: 1>} : vector<1x8x1xi32>
    %c0_i32 = arith.constant 0 : i32
    %17 = vector.broadcast %c0_i32 : i32 to vector<1x8x1xi32>
    %18 = arith.cmpi ne, %16, %17 : vector<1x8x1xi32>
    %19 = arith.extui %18 : vector<1x8x1xi1> to vector<1x8x1xi32>
    %20 = arith.sitofp %19 : vector<1x8x1xi32> to vector<1x8x1xf32>
    %c7_i32 = arith.constant 7 : i32
    %21 = vector.broadcast %c7_i32 : i32 to vector<1x8x1xi32>
    %22 = arith.cmpi ne, %16, %21 : vector<1x8x1xi32>
    %23 = arith.extui %22 : vector<1x8x1xi1> to vector<1x8x1xi32>
    %24 = arith.sitofp %23 : vector<1x8x1xi32> to vector<1x8x1xf32>
    %c1_i32 = arith.constant 1 : i32
    %25 = tpu.dynamic_rotate %15 by %c1_i32 dim 1 : vector<1x8x128xf32>, i32 -> vector<1x8x128xf32>
    %26 = vector.broadcast %20 : vector<1x8x1xf32> to vector<1x8x128xf32>
    %27 = arith.mulf %25, %26 : vector<1x8x128xf32>
    %c7_i32_9 = arith.constant 7 : i32
    %28 = tpu.dynamic_rotate %15 by %c7_i32_9 dim 1 : vector<1x8x128xf32>, i32 -> vector<1x8x128xf32>
    %29 = vector.broadcast %24 : vector<1x8x1xf32> to vector<1x8x128xf32>
    %30 = arith.mulf %28, %29 : vector<1x8x128xf32>
    %c0_10 = arith.constant 0 : index
    %31 = memref.load %arg6[%c0_10] : memref<3xf32, #tpu.memory_space<smem>>
    %32 = vector.broadcast %31 : f32 to vector<1x8x128xf32>
    %33 = arith.mulf %32, %27 : vector<1x8x128xf32>
    %c1 = arith.constant 1 : index
    %34 = memref.load %arg6[%c1] : memref<3xf32, #tpu.memory_space<smem>>
    %35 = vector.broadcast %34 : f32 to vector<1x8x128xf32>
    %36 = arith.mulf %35, %15 : vector<1x8x128xf32>
    %37 = arith.addf %33, %36 : vector<1x8x128xf32>
    %c2 = arith.constant 2 : index
    %38 = memref.load %arg6[%c2] : memref<3xf32, #tpu.memory_space<smem>>
    %39 = vector.broadcast %38 : f32 to vector<1x8x128xf32>
    %40 = arith.mulf %39, %30 : vector<1x8x128xf32>
    %41 = arith.addf %37, %40 : vector<1x8x128xf32>
    %42 = tpu.iota {dimensions = array<i32: 2>} : vector<1x1x128xi32>
    %c0_i32_11 = arith.constant 0 : i32
    %43 = vector.broadcast %c0_i32_11 : i32 to vector<1x1x128xi32>
    %44 = arith.cmpi eq, %42, %43 : vector<1x1x128xi32>
    %45 = arith.extui %44 : vector<1x1x128xi1> to vector<1x1x128xi32>
    %46 = arith.sitofp %45 : vector<1x1x128xi32> to vector<1x1x128xf32>
    %47 = arith.subf %41, %15 : vector<1x8x128xf32>
    %48 = vector.broadcast %46 : vector<1x1x128xf32> to vector<1x8x128xf32>
    %49 = arith.mulf %48, %47 : vector<1x8x128xf32>
    %50 = arith.addf %15, %49 : vector<1x8x128xf32>
    %51 = vector.shape_cast %50 : vector<1x8x128xf32> to vector<8x128xf32>
    %cst_12 = arith.constant 5.000000e-01 : f32
    %52 = vector.broadcast %cst_12 : f32 to vector<8x128xf32>
    %53 = arith.mulf %52, %51 : vector<8x128xf32>
    %cst_13 = arith.constant 0.707106769 : f32
    %54 = vector.broadcast %cst_13 : f32 to vector<8x128xf32>
    %55 = arith.mulf %51, %54 : vector<8x128xf32>
    %56 = math.erf %55 : vector<8x128xf32>
    %cst_14 = arith.constant 1.000000e+00 : f32
    %57 = vector.broadcast %cst_14 : f32 to vector<8x128xf32>
    %58 = arith.addf %57, %56 : vector<8x128xf32>
    %59 = arith.mulf %53, %58 : vector<8x128xf32>
    %60 = arith.truncf %59 : vector<8x128xf32> to vector<8x128xbf16>
    %c0_15 = arith.constant 0 : index
    %c0_16 = arith.constant 0 : index
    %61 = vector.load %arg4[%c0_15, %c0_16] : memref<128x128xbf16, #tpu.memory_space<vmem>>, vector<128x128xbf16>
    %cst_17 = arith.constant dense<0.000000e+00> : vector<8x128xf32>
    %62 = tpu.matmul %60, %61, %cst_17 {dimension_numbers = #tpu.dot_dimension_numbers<[1], [0], [0], [1], [0, 0, 1, 1], [], []>} : vector<8x128xbf16>, vector<128x128xbf16>, vector<8x128xf32> -> vector<8x128xf32>
    %c0_18 = arith.constant 0 : index
    %c0_19 = arith.constant 0 : index
    %63 = vector.load %arg5[%c0_18, %c0_19] : memref<1x128xf32, #tpu.memory_space<vmem>>, vector<1x128xf32>
    %64 = vector.broadcast %63 : vector<1x128xf32> to vector<8x128xf32>
    %65 = arith.addf %62, %64 : vector<8x128xf32>
    %66 = vector.shape_cast %65 : vector<8x128xf32> to vector<1x8x128xf32>
    %cst_20 = arith.constant dense<0.000000e+00> : vector<1x128xf32>
    %67 = vector.multi_reduction <add>, %66, %cst_20 [1] : vector<1x8x128xf32> to vector<1x128xf32>
    %cst_21 = arith.constant 8.000000e+00 : f32
    %68 = vector.broadcast %cst_21 : f32 to vector<1x128xf32>
    %69 = arith.divf %67, %68 : vector<1x128xf32>
    %70 = tpu.iota {dimensions = array<i32: 1>} : vector<1x128xi32>
    %c0_i32_22 = arith.constant 0 : i32
    %71 = vector.broadcast %c0_i32_22 : i32 to vector<1x128xi32>
    %72 = arith.cmpi ne, %70, %71 : vector<1x128xi32>
    %73 = arith.extui %72 : vector<1x128xi1> to vector<1x128xi32>
    %74 = arith.sitofp %73 : vector<1x128xi32> to vector<1x128xf32>
    %c127_i32 = arith.constant 127 : i32
    %75 = vector.broadcast %c127_i32 : i32 to vector<1x128xi32>
    %76 = arith.cmpi ne, %70, %75 : vector<1x128xi32>
    %77 = arith.extui %76 : vector<1x128xi1> to vector<1x128xi32>
    %78 = arith.sitofp %77 : vector<1x128xi32> to vector<1x128xf32>
    %c1_i32_23 = arith.constant 1 : i32
    %79 = tpu.dynamic_rotate %69 by %c1_i32_23 dim 1 : vector<1x128xf32>, i32 -> vector<1x128xf32>
    %80 = arith.mulf %79, %74 : vector<1x128xf32>
    %c127_i32_24 = arith.constant 127 : i32
    %81 = tpu.dynamic_rotate %69 by %c127_i32_24 dim 1 : vector<1x128xf32>, i32 -> vector<1x128xf32>
    %82 = arith.mulf %81, %78 : vector<1x128xf32>
    %c0_25 = arith.constant 0 : index
    %83 = memref.load %arg7[%c0_25] : memref<3xf32, #tpu.memory_space<smem>>
    %84 = vector.broadcast %83 : f32 to vector<1x128xf32>
    %85 = arith.mulf %84, %80 : vector<1x128xf32>
    %c1_26 = arith.constant 1 : index
    %86 = memref.load %arg7[%c1_26] : memref<3xf32, #tpu.memory_space<smem>>
    %87 = vector.broadcast %86 : f32 to vector<1x128xf32>
    %88 = arith.mulf %87, %69 : vector<1x128xf32>
    %89 = arith.addf %85, %88 : vector<1x128xf32>
    %c2_27 = arith.constant 2 : index
    %90 = memref.load %arg7[%c2_27] : memref<3xf32, #tpu.memory_space<smem>>
    %91 = vector.broadcast %90 : f32 to vector<1x128xf32>
    %92 = arith.mulf %91, %82 : vector<1x128xf32>
    %93 = arith.addf %89, %92 : vector<1x128xf32>
    %94 = arith.negf %93 : vector<1x128xf32>
    %95 = math.exp %94 : vector<1x128xf32>
    %cst_28 = arith.constant 1.000000e+00 : f32
    %96 = vector.broadcast %cst_28 : f32 to vector<1x128xf32>
    %97 = arith.addf %96, %95 : vector<1x128xf32>
    %98 = arith.divf %96, %97 : vector<1x128xf32>
    %99 = vector.shape_cast %98 : vector<1x128xf32> to vector<1x1x128xf32>
    %100 = vector.broadcast %99 : vector<1x1x128xf32> to vector<1x8x128xf32>
    %101 = arith.mulf %66, %100 : vector<1x8x128xf32>
    %c0_29 = arith.constant 0 : index
    %c0_30 = arith.constant 0 : index
    %c0_31 = arith.constant 0 : index
    %102 = vector.load %arg8[%c0_29, %c0_30, %c0_31] : memref<1x8x128xf32, #tpu.memory_space<vmem>>, vector<1x8x128xf32>
    tpu.vector_store %arg8[%c0_29, %c0_30, %c0_31], %101 {strides = array<i32>} : memref<1x8x128xf32, #tpu.memory_space<vmem>>, vector<1x8x128xf32>,
    return
  }
  func.func @transform_0(%arg0: i32) -> (i32, i32, i32) {
    %c0_i32 = arith.constant 0 : i32
    %c0_i32_0 = arith.constant 0 : i32
    %c0_i32_1 = arith.constant 0 : i32
    return %arg0, %c0_i32, %c0_i32_0 : i32, i32, i32
  }
  func.func @transform_1(%arg0: i32) -> (i32, i32) {
    %c0_i32 = arith.constant 0 : i32
    %c0_i32_0 = arith.constant 0 : i32
    %c0_i32_1 = arith.constant 0 : i32
    return %c0_i32, %c0_i32_0 : i32, i32
  }
  func.func @transform_2(%arg0: i32) -> (i32, i32) {
    %c0_i32 = arith.constant 0 : i32
    %c0_i32_0 = arith.constant 0 : i32
    %c0_i32_1 = arith.constant 0 : i32
    return %c0_i32, %c0_i32_0 : i32, i32
  }
  func.func @transform_3(%arg0: i32) -> (i32, i32) {
    %c0_i32 = arith.constant 0 : i32
    %c0_i32_0 = arith.constant 0 : i32
    %c0_i32_1 = arith.constant 0 : i32
    return %c0_i32, %c0_i32_0 : i32, i32
  }
  func.func @transform_4(%arg0: i32) -> (i32, i32) {
    %c0_i32 = arith.constant 0 : i32
    %c0_i32_0 = arith.constant 0 : i32
    %c0_i32_1 = arith.constant 0 : i32
    return %c0_i32, %c0_i32_0 : i32, i32
  }
  func.func @transform_5(%arg0: i32) -> i32 {
    %c0_i32 = arith.constant 0 : i32
    %c0_i32_0 = arith.constant 0 : i32
    return %c0_i32 : i32
  }
  func.func @transform_6(%arg0: i32) -> i32 {
    %c0_i32 = arith.constant 0 : i32
    %c0_i32_0 = arith.constant 0 : i32
    return %c0_i32 : i32
  }
  func.func @transform_7(%arg0: i32) -> (i32, i32, i32) {
    %c0_i32 = arith.constant 0 : i32
    %c0_i32_0 = arith.constant 0 : i32
    %c0_i32_1 = arith.constant 0 : i32
    return %arg0, %c0_i32, %c0_i32_0 : i32, i32, i32
  }
}

</mosaic_0001>

<llo_original>
// kernel: tpu_custom_call.1
$region0: #{tpu_custom_call.1}
  #allocation0 [shape = 'u32[]', space=smem, size = 0x4, offset = 0x4, fixed_abs, tag = 'smem constant byte address 0x4 - core index']
  #allocation1 [shape = 'u32[144,128]{1,0:T(1,128)}', space=vmem, size = 0x12000, scoped, tag = 'internal scratch']
  %s0 = inlined_call_operand.hbm [shape: bf16[2,8,32], index: 0, kind: input, shape index: {}]
  %s1 = inlined_call_operand.hbm [shape: bf16[32,128], index: 1, kind: input, shape index: {}]
  %s2 = inlined_call_operand.vmem [shape: f32[1,128], index: 2, kind: input, shape index: {}]
  %s3 = inlined_call_operand.hbm [shape: bf16[128,128], index: 3, kind: input, shape index: {}]
  %s4 = inlined_call_operand.vmem [shape: f32[1,128], index: 4, kind: input, shape index: {}]
  %s5 = inlined_call_operand.vmem [shape: f32[3], index: 5, kind: input, shape index: {}]
  %s6 = inlined_call_operand.vmem [shape: f32[3], index: 6, kind: input, shape index: {}]
  %s7 = inlined_call_operand.hbm [shape: f32[2,8,128], index: 7, kind: output, shape index: {}]
  %s8 = sld [smem:[#allocation0]]
  $region81: #{tpu_custom_call.1} parent=0
    _
  %s10 = ssub.s32 1, %s8
  %s11 = scalar_select 0, %s10, %s8
  $region1: #{tpu_custom_call.1} parent=0
    #allocation2 [shape = 'u8[4096]{0}', space=vmem, size = 0x1000, scoped, tag = 'input window, operand 0']
    #allocation3 [shape = 's32[2]{0}', space=sflag, size = 0x8, scoped, tag = 'scoped memory for tpu_custom_call.1']
    #allocation4 [shape = 's32[2]{0}', space=sflag, size = 0x8, scoped, tag = 'scoped memory for tpu_custom_call.1']
    #allocation5 [shape = 's32[2]{0}', space=sflag, size = 0x8, scoped, tag = 'scoped memory for tpu_custom_call.1']
    #allocation6 [shape = 'u8[8192]{0}', space=vmem, size = 0x2000, scoped, tag = 'input window, operand 1, single buffered']
    #allocation7 [shape = 's32[1]{0}', space=sflag, size = 0x4, scoped, tag = 'scoped memory for tpu_custom_call.1']
    #allocation8 [shape = 'u8[32768]{0}', space=vmem, size = 0x8000, scoped, tag = 'input window, operand 3, single buffered']
    #allocation9 [shape = 'u8[512]{0}', space=smem, size = 0x200, scoped, tag = 'input window, operand 5, single buffered']
    #allocation10 [shape = 'u8[512]{0}', space=smem, size = 0x200, scoped, tag = 'input window, operand 6, single buffered']
    #allocation11 [shape = 's32[1]{0}', space=sflag, size = 0x4, scoped, tag = 'scoped memory for tpu_custom_call.1']
    #allocation12 [shape = 'u8[8192]{0}', space=vmem, size = 0x2000, scoped, tag = 'output window, operand 0']
    %12 = vsyncpa [#allocation3], 0
    %s13 = scalar_lea.sflag [#allocation3], 1
    %14 = vsyncpa %s13, 0
    %15 = vsyncpa [#allocation7], 0
    %16 = vsyncpa [#allocation5], 0
    %17 = vsyncpa [#allocation11], 0
    %18 = vsyncpa [#allocation4], 0
    %s19 = scalar_lea.sflag [#allocation4], 1
    %20 = vsyncpa %s19, 0
    loop: start=0, step=1, limit=4
    $region2: #{tpu_custom_call.1} parent=1 // loop_pre_header
      _
    $region3: #{tpu_custom_call.1} parent=1 // loop_header
      %s22 = sphi 0, %s26
      %p23 = scmp.ge.s32.totalorder %s22, 4
      %s32 = sphi 0, %s34
      %s35 = sphi 0, %s32
      %s36 = sphi 0, %s35
      %s52 = sphi 0, %s36
      %s56 = sphi 0, %s56
      %s58 = sphi 0, %s56
      %s59 = sphi 0, %s58
      %s73 = sphi 0, %s59
      %s77 = sphi 0, %s77
      %s79 = sphi 0, %s77
      %s80 = sphi 0, %s79
      %s94 = sphi 0, %s80
      %s98 = sphi 0, %s98
      %s100 = sphi 0, %s98
      %s101 = sphi 0, %s100
      %s115 = sphi 0, %s101
      %s119 = sphi 0, %s119
      %s121 = sphi 0, %s119
      %s122 = sphi 0, %s121
      %s136 = sphi 0, %s122
      %s140 = sphi 0, %s140
      %s142 = sphi 0, %s140
      %s143 = sphi 0, %s142
      %s157 = sphi 0, %s143
      %s161 = sphi 0, %s161
      %s163 = sphi 0, %s161
      %s164 = sphi 0, %s163
      %s178 = sphi 0, %s164
      %s184 = sphi 0, %s186
      %s187 = sphi 0, %s184
      %s188 = sphi 0, %s187
      %s204 = sphi 0, %s188
    $region4: #{tpu_custom_call.1} parent=1 // loop_header_branch
      %25 = sbr.rel (%p23) target = $region8
    $region5: #{tpu_custom_call.1} parent=1 // loop_body
      %s27 = ssub.s32 %s22, 1
      %s28 = ssub.s32 %s22, 2
      %s29 = sadd.s32 %s22, 1
      %s30 = ssub.s32 %s22, %s29
      %p31 = scmp.eq.s32.totalorder %s30, 0
      %s33 = sadd.s32 %s32, 1
      %s34 = scalar_select %p31, %s32, %s33
      %p37 = pneg %p31
      %p38 = scmp.eq.s32.totalorder %s22, 1
      %p39 = por %p37, %p38
      %p40 = scmp.ne.s32.totalorder %s32, %s35
      %p41 = scmp.eq.s32.totalorder %s22, 0
      %p42 = por %p40, %p41
      %p43 = scmp.ne.s32.totalorder %s32, %s35
      %p44 = scmp.eq.s32.totalorder %s27, 1
      %p45 = por %p43, %p44
      %p46 = scmp.ne.s32.totalorder %s35, %s36
      %p47 = scmp.eq.s32.totalorder %s27, 0
      %p48 = por %p46, %p47
      %p49 = scmp.ne.s32.totalorder %s35, %s36
      %p50 = scmp.eq.s32.totalorder %s28, 1
      %p51 = por %p49, %p50
      %p53 = scmp.ne.s32.totalorder %s36, %s52
      %p54 = scmp.eq.s32.totalorder %s28, 0
      %p55 = por %p53, %p54
      %s57 = sadd.s32 %s56, 1
      %p60 = scmp.eq.s32.totalorder %s22, 1
      %p61 = scmp.ne.s32.totalorder %s56, %s58
      %p62 = scmp.eq.s32.totalorder %s22, 0
      %p63 = por %p61, %p62
      %p64 = scmp.ne.s32.totalorder %s56, %s58
      %p65 = scmp.eq.s32.totalorder %s27, 1
      %p66 = por %p64, %p65
      %p67 = scmp.ne.s32.totalorder %s58, %s59
      %p68 = scmp.eq.s32.totalorder %s27, 0
      %p69 = por %p67, %p68
      %p70 = scmp.ne.s32.totalorder %s58, %s59
      %p71 = scmp.eq.s32.totalorder %s28, 1
      %p72 = por %p70, %p71
      %p74 = scmp.ne.s32.totalorder %s59, %s73
      %p75 = scmp.eq.s32.totalorder %s28, 0
      %p76 = por %p74, %p75
      %s78 = sadd.s32 %s77, 1
      %p81 = scmp.eq.s32.totalorder %s22, 1
      %p82 = scmp.ne.s32.totalorder %s77, %s79
      %p83 = scmp.eq.s32.totalorder %s22, 0
      %p84 = por %p82, %p83
      %p85 = scmp.ne.s32.totalorder %s77, %s79
      %p86 = scmp.eq.s32.totalorder %s27, 1
      %p87 = por %p85, %p86
      %p88 = scmp.ne.s32.totalorder %s79, %s80
      %p89 = scmp.eq.s32.totalorder %s27, 0
      %p90 = por %p88, %p89
      %p91 = scmp.ne.s32.totalorder %s79, %s80
      %p92 = scmp.eq.s32.totalorder %s28, 1
      %p93 = por %p91, %p92
      %p95 = scmp.ne.s32.totalorder %s80, %s94
      %p96 = scmp.eq.s32.totalorder %s28, 0
      %p97 = por %p95, %p96
      %s99 = sadd.s32 %s98, 1
      %p102 = scmp.eq.s32.totalorder %s22, 1
      %p103 = scmp.ne.s32.totalorder %s98, %s100
      %p104 = scmp.eq.s32.totalorder %s22, 0
      %p105 = por %p103, %p104
      %p106 = scmp.ne.s32.totalorder %s98, %s100
      %p107 = scmp.eq.s32.totalorder %s27, 1
      %p108 = por %p106, %p107
      %p109 = scmp.ne.s32.totalorder %s100, %s101
      %p110 = scmp.eq.s32.totalorder %s27, 0
      %p111 = por %p109, %p110
      %p112 = scmp.ne.s32.totalorder %s100, %s101
      %p113 = scmp.eq.s32.totalorder %s28, 1
      %p114 = por %p112, %p113
      %p116 = scmp.ne.s32.totalorder %s101, %s115
      %p117 = scmp.eq.s32.totalorder %s28, 0
      %p118 = por %p116, %p117
      %s120 = sadd.s32 %s119, 1
      %p123 = scmp.eq.s32.totalorder %s22, 1
      %p124 = scmp.ne.s32.totalorder %s119, %s121
      %p125 = scmp.eq.s32.totalorder %s22, 0
      %p126 = por %p124, %p125
      %p127 = scmp.ne.s32.totalorder %s119, %s121
      %p128 = scmp.eq.s32.totalorder %s27, 1
      %p129 = por %p127, %p128
      %p130 = scmp.ne.s32.totalorder %s121, %s122
      %p131 = scmp.eq.s32.totalorder %s27, 0
      %p132 = por %p130, %p131
      %p133 = scmp.ne.s32.totalorder %s121, %s122
      %p134 = scmp.eq.s32.totalorder %s28, 1
      %p135 = por %p133, %p134
      %p137 = scmp.ne.s32.totalorder %s122, %s136
      %p138 = scmp.eq.s32.totalorder %s28, 0
      %p139 = por %p137, %p138
      %s141 = sadd.s32 %s140, 1
      %p144 = scmp.eq.s32.totalorder %s22, 1
      %p145 = scmp.ne.s32.totalorder %s140, %s142
      %p146 = scmp.eq.s32.totalorder %s22, 0
      %p147 = por %p145, %p146
      %p148 = scmp.ne.s32.totalorder %s140, %s142
      %p149 = scmp.eq.s32.totalorder %s27, 1
      %p150 = por %p148, %p149
      %p151 = scmp.ne.s32.totalorder %s142, %s143
      %p152 = scmp.eq.s32.totalorder %s27, 0
      %p153 = por %p151, %p152
      %p154 = scmp.ne.s32.totalorder %s142, %s143
      %p155 = scmp.eq.s32.totalorder %s28, 1
      %p156 = por %p154, %p155
      %p158 = scmp.ne.s32.totalorder %s143, %s157
      %p159 = scmp.eq.s32.totalorder %s28, 0
      %p160 = por %p158, %p159
      %s162 = sadd.s32 %s161, 1
      %p165 = scmp.eq.s32.totalorder %s22, 1
      %p166 = scmp.ne.s32.totalorder %s161, %s163
      %p167 = scmp.eq.s32.totalorder %s22, 0
      %p168 = por %p166, %p167
      %p169 = scmp.ne.s32.totalorder %s161, %s163
      %p170 = scmp.eq.s32.totalorder %s27, 1
      %p171 = por %p169, %p170
      %p172 = scmp.ne.s32.totalorder %s163, %s164
      %p173 = scmp.eq.s32.totalorder %s27, 0
      %p174 = por %p172, %p173
      %p175 = scmp.ne.s32.totalorder %s163, %s164
      %p176 = scmp.eq.s32.totalorder %s28, 1
      %p177 = por %p175, %p176
      %p179 = scmp.ne.s32.totalorder %s164, %s178
      %p180 = scmp.eq.s32.totalorder %s28, 0
      %p181 = por %p179, %p180
      %s182 = ssub.s32 %s22, %s29
      %p183 = scmp.eq.s32.totalorder %s182, 0
      %s185 = sadd.s32 %s184, 1
      %s186 = scalar_select %p183, %s184, %s185
      %p189 = pneg %p183
      %p190 = scmp.eq.s32.totalorder %s22, 1
      %p191 = por %p189, %p190
      %p192 = scmp.ne.s32.totalorder %s184, %s187
      %p193 = scmp.eq.s32.totalorder %s22, 0
      %p194 = por %p192, %p193
      %p195 = scmp.ne.s32.totalorder %s184, %s187
      %p196 = scmp.eq.s32.totalorder %s27, 1
      %p197 = por %p195, %p196
      %p198 = scmp.ne.s32.totalorder %s187, %s188
      %p199 = scmp.eq.s32.totalorder %s27, 0
      %p200 = por %p198, %p199
      %p201 = scmp.ne.s32.totalorder %s187, %s188
      %p202 = scmp.eq.s32.totalorder %s28, 1
      %p203 = por %p201, %p202
      %p205 = scmp.ne.s32.totalorder %s188, %s204
      %p206 = scmp.eq.s32.totalorder %s28, 0
      %p207 = por %p205, %p206
      %p208 = scmp.le.s32.totalorder 1, %s22
      %p209 = scmp.lt.s32.totalorder %s22, 3
      %p210 = pnand %p208, %p209
      %p211 = pneg %p210
      // Predicated region
      $region9: #{tpu_custom_call.1} parent=5 // pred_check
        _
      $region10: #{tpu_custom_call.1} parent=5 // pred_check_branch
        %213 = sbr.rel (%p210) target = $region12
      $region11: #{tpu_custom_call.1} parent=5 // pred_region
        %s214 = ssub.s32 %s22, 1
        // Predicated region
        $region13: #{tpu_custom_call.1} parent=11 // pred_check
          %p215 = pneg %p69
        $region14: #{tpu_custom_call.1} parent=11 // pred_check_branch
          %217 = sbr.rel (%p215) target = $region16
        $region15: #{tpu_custom_call.1} parent=11 // pred_region
          %s219 = ssub.s32 256, 256
          %220 = vsyncadd [#allocation7], %s219
          %s221 = sshll.u32 [#allocation6], 4
          %s222 = int_to_ptr.vmem [resolvable:$true] %s221
          %227 = dma.hbm_to_vmem [thread:$0]  %s1, 256, %s222, [#allocation7], 64, 64, 4
        $region16: #{tpu_custom_call.1} parent=11 // pred_fallthru
          _
        // Predicated region
        $region17: #{tpu_custom_call.1} parent=11 // pred_check
          %p228 = pneg %p90
        $region18: #{tpu_custom_call.1} parent=11 // pred_check_branch
          %230 = sbr.rel (%p228) target = $region20
        $region19: #{tpu_custom_call.1} parent=11 // pred_region
          _
        $region20: #{tpu_custom_call.1} parent=11 // pred_fallthru
          _
        // Predicated region
        $region21: #{tpu_custom_call.1} parent=11 // pred_check
          %p231 = pneg %p111
        $region22: #{tpu_custom_call.1} parent=11 // pred_check_branch
          %233 = sbr.rel (%p231) target = $region24
        $region23: #{tpu_custom_call.1} parent=11 // pred_region
          %s235 = ssub.s32 1024, 1024
          %236 = vsyncadd [#allocation7], %s235
          %s237 = sshll.u32 [#allocation8], 4
          %s238 = int_to_ptr.vmem [resolvable:$true] %s237
          %243 = dma.hbm_to_vmem [thread:$0]  %s3, 1024, %s238, [#allocation7], 64, 64, 4
        $region24: #{tpu_custom_call.1} parent=11 // pred_fallthru
          _
        // Predicated region
        $region25: #{tpu_custom_call.1} parent=11 // pred_check
          %p244 = pneg %p132
        $region26: #{tpu_custom_call.1} parent=11 // pred_check_branch
          %246 = sbr.rel (%p244) target = $region28
        $region27: #{tpu_custom_call.1} parent=11 // pred_region
          _
        $region28: #{tpu_custom_call.1} parent=11 // pred_fallthru
          _
        // Predicated region
        $region29: #{tpu_custom_call.1} parent=11 // pred_check
          %p247 = pneg %p153
        $region30: #{tpu_custom_call.1} parent=11 // pred_check_branch
          %249 = sbr.rel (%p247) target = $region32
        $region31: #{tpu_custom_call.1} parent=11 // pred_region
          %s251 = ssub.s32 16, 16
          %252 = vsyncadd [#allocation5], %s251
          %s254 = sshll.u32 %s5, 4
          %s255 = int_to_ptr.vmem [resolvable:$true] %s254
          %257 = dma.vmem_to_smem %s255, 16, [#allocation9], [#allocation5]
        $region32: #{tpu_custom_call.1} parent=11 // pred_fallthru
          _
        // Predicated region
        $region33: #{tpu_custom_call.1} parent=11 // pred_check
          %p258 = pneg %p174
        $region34: #{tpu_custom_call.1} parent=11 // pred_check_branch
          %260 = sbr.rel (%p258) target = $region36
        $region35: #{tpu_custom_call.1} parent=11 // pred_region
          %s262 = ssub.s32 16, 16
          %263 = vsyncadd [#allocation11], %s262
          %s265 = sshll.u32 %s6, 4
          %s266 = int_to_ptr.vmem [resolvable:$true] %s265
          %268 = dma.vmem_to_smem %s266, 16, [#allocation10], [#allocation11]
        $region36: #{tpu_custom_call.1} parent=11 // pred_fallthru
          _
      $region12: #{tpu_custom_call.1} parent=5 // pred_fallthru
        _
      %p269 = scmp.lt.s32.totalorder %s22, 2
      // Predicated region
      $region37: #{tpu_custom_call.1} parent=5 // pred_check
        %p270 = pneg %p269
      $region38: #{tpu_custom_call.1} parent=5 // pred_check_branch
        %272 = sbr.rel (%p270) target = $region40
      $region39: #{tpu_custom_call.1} parent=5 // pred_region
        // Predicated region
        $region41: #{tpu_custom_call.1} parent=39 // pred_check
          %p273 = pneg %p42
        $region42: #{tpu_custom_call.1} parent=39 // pred_check_branch
          %275 = sbr.rel (%p273) target = $region44
        $region43: #{tpu_custom_call.1} parent=39 // pred_region
          %s276 = sand.u32 %s32, 1
          %s277 = scalar_lea.sflag [#allocation3], %s276
          %s278 = sand.u32 %s32, 1
          %s279 = smul.addr %s278, 4
          %s280 = scalar_lea.vmem [#allocation2], %s279
          %s282 = ssub.s32 64, 64
          %283 = vsyncadd %s277, %s282
          %s284 = smul.addr %s22, 64
          %s285 = scalar_lea.hbm %s0, %s284
          %s287 = sshll.u32 %s280, 4
          %s288 = int_to_ptr.vmem [resolvable:$true] %s287
          %290 = dma.hbm_to_vmem [thread:$0]  %s285, 64, %s288, %s277
        $region44: #{tpu_custom_call.1} parent=39 // pred_fallthru
          _
      $region40: #{tpu_custom_call.1} parent=5 // pred_fallthru
        _
      %p291 = scmp.le.s32.totalorder 1, %s22
      %p292 = scmp.lt.s32.totalorder %s22, 3
      %p293 = pnand %p291, %p292
      %p294 = pneg %p293
      // Predicated region
      $region45: #{tpu_custom_call.1} parent=5 // pred_check
        _
      $region46: #{tpu_custom_call.1} parent=5 // pred_check_branch
        %296 = sbr.rel (%p293) target = $region48
      $region47: #{tpu_custom_call.1} parent=5 // pred_region
        %s297 = ssub.s32 %s22, 1
        %s298 = sand.u32 %s35, 1
        %s299 = scalar_lea.sflag [#allocation3], %s298
        %s300 = sand.u32 %s35, 1
        %s301 = smul.addr %s300, 4
        %s302 = scalar_lea.vmem [#allocation2], %s301
        // Predicated region
        $region49: #{tpu_custom_call.1} parent=47 // pred_check
          %p303 = pneg %p48
        $region50: #{tpu_custom_call.1} parent=47 // pred_check_branch
          %305 = sbr.rel (%p303) target = $region52
        $region51: #{tpu_custom_call.1} parent=47 // pred_region
          %306 = dma.done %s299, 64
        $region52: #{tpu_custom_call.1} parent=47 // pred_fallthru
          _
        // Predicated region
        $region53: #{tpu_custom_call.1} parent=47 // pred_check
          %p307 = pneg %p69
        $region54: #{tpu_custom_call.1} parent=47 // pred_check_branch
          %309 = sbr.rel (%p307) target = $region56
        $region55: #{tpu_custom_call.1} parent=47 // pred_region
          %310 = dma.done [#allocation7], 256
        $region56: #{tpu_custom_call.1} parent=47 // pred_fallthru
          _
        // Predicated region
        $region57: #{tpu_custom_call.1} parent=47 // pred_check
          %p311 = pneg %p111
        $region58: #{tpu_custom_call.1} parent=47 // pred_check_branch
          %313 = sbr.rel (%p311) target = $region60
        $region59: #{tpu_custom_call.1} parent=47 // pred_region
          %314 = dma.done [#allocation7], 1024
        $region60: #{tpu_custom_call.1} parent=47 // pred_fallthru
          _
        // Predicated region
        $region61: #{tpu_custom_call.1} parent=47 // pred_check
          %p315 = pneg %p153
        $region62: #{tpu_custom_call.1} parent=47 // pred_check_branch
          %317 = sbr.rel (%p315) target = $region64
        $region63: #{tpu_custom_call.1} parent=47 // pred_region
          %318 = dma.done [#allocation5], 16
        $region64: #{tpu_custom_call.1} parent=47 // pred_fallthru
          _
        // Predicated region
        $region65: #{tpu_custom_call.1} parent=47 // pred_check
          %p319 = pneg %p174
        $region66: #{tpu_custom_call.1} parent=47 // pred_check_branch
          %321 = sbr.rel (%p319) target = $region68
        $region67: #{tpu_custom_call.1} parent=47 // pred_region
          %322 = dma.done [#allocation11], 16
        $region68: #{tpu_custom_call.1} parent=47 // pred_fallthru
          _
        %323 = sfence
        %s324 = sand.u32 %s35, 1
        %s325 = scalar_lea.sflag [#allocation3], %s324
        %s326 = sand.u32 %s35, 1
        %s327 = smul.addr %s326, 4
        %s328 = scalar_lea.vmem [#allocation2], %s327
        %p329 = pneg %p48
        %p330 = pneg %p45
        %p331 = pneg %p69
        %p332 = pneg %p66
        %p333 = pneg %p90
        %p334 = pneg %p87
        %p335 = pneg %p111
        %p336 = pneg %p108
        %p337 = pneg %p132
        %p338 = pneg %p129
        %p339 = pneg %p153
        %p340 = pneg %p150
        %p341 = pneg %p174
        %p342 = pneg %p171
        %p343 = pneg %p200
        %p344 = pneg %p197
        %s345 = sand.u32 %s187, 1
        %s346 = scalar_lea.sflag [#allocation4], %s345
        %s347 = sand.u32 %s187, 1
        %s348 = smul.addr %s347, 8
        %s349 = scalar_lea.vmem [#allocation12], %s348
        %v351 = vld [vmem:[%s302] sm:$0xf]
        %v352 = vld [vmem:[#allocation6] sm:$0xf]
        %v353 = vld [vmem:[#allocation6 + $0x4] sm:$0xf]
        %v354 = vld [vmem:[#allocation6 + $0x8] sm:$0xf]
        %v355 = vld [vmem:[#allocation6 + $0xc] sm:$0xf]
        %v356 = vld [vmem:[%s2] sm:$0x1]
        %v358 = vlaneseq
        %v359 = vshrl.u32 %v358, 7
        %v360 = vsub.s32 0, %v359
        %v361 = vrot.slane %v356, %v360
        %v367 = vunpack.c.l.b16 %v352
        %v368 = vunpack.c.l.b16 %v353
        %v369 = vunpack.c.l.b16 %v354
        %v370 = vunpack.c.l.b16 %v355
        %v371 = vpack.c.b16 %v368, %v367
        %v372 = vpack.c.b16 %v370, %v369
        %vm375 = vcmask 261120
        %v377 = vsel %vm375, %v351, 0
        %379 = vmatprep.subr.bf16.mxu0 0
        %380 = vmatpush1.bf16.msra.mxu0 0
        %381 = vmatprep.subr.bf16.mxu0 0
        %382 = vmatpush1.bf16.msra.mxu0 0
        %383 = vmatprep.subr.bf16.mxu0 0
        %384 = vmatpush1.bf16.msra.mxu0 0
        %385 = vmatprep.subr.bf16.mxu0 0
        %386 = vmatpush1.bf16.msra.mxu0 0
        %387 = vmatprep.subr.bf16.mxu0 0
        %388 = vmatpush1.bf16.msra.mxu0 0
        %389 = vmatprep.subr.bf16.mxu0 0
        %390 = vmatpush1.bf16.msra.mxu0 0
        %391 = vmatprep.subr.bf16.mxu0 0
        %392 = vmatpush1.bf16.msra.mxu0 %v372
        %393 = vmatprep.subr.bf16.mxu0 0
        %394 = vmatpush1.bf16.msra.mxu0 %v371
        %395 = vmatprep.subr.bf16.mxu0 0
        %396 = vmatpush2.bf16.msra.mxu0 0
        %397 = vmatprep.subr.bf16.mxu0 0
        %398 = vmatpush2.bf16.msra.mxu0 0
        %399 = vmatprep.subr.bf16.mxu0 0
        %400 = vmatpush2.bf16.msra.mxu0 0
        %401 = vmatprep.subr.bf16.mxu0 0
        %402 = vmatpush2.bf16.msra.mxu0 0
        %403 = vmatprep.subr.bf16.mxu0 0
        %404 = vmatpush2.bf16.msra.mxu0 0
        %405 = vmatprep.subr.bf16.mxu0 0
        %406 = vmatpush2.bf16.msra.mxu0 0
        %407 = vmatprep.subr.bf16.mxu0 0
        %408 = vmatpush2.bf16.msra.mxu0 0
        %409 = vmatprep.subr.bf16.mxu0 0
        %410 = vmatpush2.bf16.msra.mxu0 0
        %411 = vmatprep.mubr.bf16.mxu0 0
        %412 = vmatmul.mubr.bf16.gmra.mxu0 %v377
        %v413 = vpop.f32.mrf.mxu0
        %v414 = vadd.f32 %v361, %v413
        %v415 = vpop.f32.mrf.mxu0
        %v416 = vpop.f32.mrf.mxu0
        %v417 = vpop.f32.mrf.mxu0
        %418 = vdwg.mxu0
        %v419 = vmul.f32 %v414, 0.5
        %v420 = vmul.f32 %v414, 0.70710677
        %v421 = verf.f32.pop %v420
        %v422 = vadd.f32 %v421, 1.0
        %v423 = vmul.f32 %v419, %v422
        %v424 = vlaneseq
        %v425 = vshrl.u32 %v424, 7
        %vm426 = vcmp.ne.s32.totalorder %v425, 0
        %v427 = vsel %vm426, 1, 0
        %v428 = vcvt.s32.f32 %v427
        %vm429 = vcmp.ne.s32.totalorder %v425, 7
        %v430 = vsel %vm429, 1, 0
        %v431 = vcvt.s32.f32 %v430
        %v432 = vrot.slane %v423, 7
        %v433 = vmul.f32 %v432, %v428
        %v434 = vrot.slane %v423, 1
        %v435 = vmul.f32 %v434, %v431
        %s436 = sld [smem:[#allocation9]]
        %v437 = vstv %s436
        %v438 = vmul.f32 %v437, %v433
        %s439 = sld [smem:[#allocation9 + $0x1]]
        %v440 = vstv %s439
        %v441 = vmul.f32 %v440, %v423
        %v442 = vadd.f32 %v438, %v441
        %s443 = sld [smem:[#allocation9 + $0x2]]
        %v444 = vstv %s443
        %v445 = vmul.f32 %v444, %v435
        %v446 = vadd.f32 %v442, %v445
        %v447 = vlaneseq
        %v448 = vand.u32 %v447, 127
        %vm449 = vcmp.eq.s32.totalorder %v448, 0
        %v450 = vsel %vm449, 1, 0
        %v451 = vcvt.s32.f32 %v450
        %v452 = vsub.f32 %v446, %v423
        %v453 = vmul.f32 %v451, %v452
        %v454 = vadd.f32 %v423, %v453
        %v455 = vmul.f32 %v454, 0.5
        %v456 = vmul.f32 %v454, 0.70710677
        %v457 = verf.f32.pop %v456
        %v458 = vadd.f32 %v457, 1.0
        %v459 = vmul.f32 %v455, %v458
        %v460 = vpack.c.bf16 %v459, %v459
        %v461 = vld [vmem:[#allocation8] sm:$0xf]
        %v462 = vld [vmem:[#allocation8 + $0x4] sm:$0xf]
        %v463 = vld [vmem:[#allocation8 + $0x8] sm:$0xf]
        %v464 = vld [vmem:[#allocation8 + $0xc] sm:$0xf]
        %v465 = vld [vmem:[#allocation8 + $0x10] sm:$0xf]
        %v466 = vld [vmem:[#allocation8 + $0x14] sm:$0xf]
        %v467 = vld [vmem:[#allocation8 + $0x18] sm:$0xf]
        %v468 = vld [vmem:[#allocation8 + $0x1c] sm:$0xf]
        %v469 = vld [vmem:[#allocation8 + $0x20] sm:$0xf]
        %v470 = vld [vmem:[#allocation8 + $0x24] sm:$0xf]
        %v471 = vld [vmem:[#allocation8 + $0x28] sm:$0xf]
        %v472 = vld [vmem:[#allocation8 + $0x2c] sm:$0xf]
        %v473 = vld [vmem:[#allocation8 + $0x30] sm:$0xf]
        %v474 = vld [vmem:[#allocation8 + $0x34] sm:$0xf]
        %v475 = vld [vmem:[#allocation8 + $0x38] sm:$0xf]
        %v476 = vld [vmem:[#allocation8 + $0x3c] sm:$0xf]
        %v477 = vld [vmem:[%s4] sm:$0x1]
        %v479 = vlaneseq
        %v480 = vshrl.u32 %v479, 7
        %v481 = vsub.s32 0, %v480
        %v482 = vrot.slane %v477, %v481
        %v500 = vunpack.c.l.b16 %v461
        %v501 = vunpack.c.l.b16 %v462
        %v502 = vunpack.c.l.b16 %v463
        %v503 = vunpack.c.l.b16 %v464
        %v504 = vunpack.c.l.b16 %v465
        %v505 = vunpack.c.l.b16 %v466
        %v506 = vunpack.c.l.b16 %v467
        %v507 = vunpack.c.l.b16 %v468
        %v508 = vunpack.c.l.b16 %v469
        %v509 = vunpack.c.l.b16 %v470
        %v510 = vunpack.c.l.b16 %v471
        %v511 = vunpack.c.l.b16 %v472
        %v512 = vunpack.c.l.b16 %v473
        %v513 = vunpack.c.l.b16 %v474
        %v514 = vunpack.c.l.b16 %v475
        %v515 = vunpack.c.l.b16 %v476
        %v516 = vpack.c.b16 %v501, %v500
        %v517 = vpack.c.b16 %v503, %v502
        %v518 = vpack.c.b16 %v505, %v504
        %v519 = vpack.c.b16 %v507, %v506
        %v520 = vpack.c.b16 %v509, %v508
        %v521 = vpack.c.b16 %v511, %v510
        %v522 = vpack.c.b16 %v513, %v512
        %v523 = vpack.c.b16 %v515, %v514
        %532 = vmatprep.subr.bf16.mxu0 0
        %533 = vmatpush1.bf16.msra.mxu0 %v523
        %534 = vmatprep.subr.bf16.mxu0 0
        %535 = vmatpush1.bf16.msra.mxu0 %v522
        %536 = vmatprep.subr.bf16.mxu0 0
        %537 = vmatpush1.bf16.msra.mxu0 %v521
        %538 = vmatprep.subr.bf16.mxu0 0
        %539 = vmatpush1.bf16.msra.mxu0 %v520
        %540 = vmatprep.subr.bf16.mxu0 0
        %541 = vmatpush1.bf16.msra.mxu0 %v519
        %542 = vmatprep.subr.bf16.mxu0 0
        %543 = vmatpush1.bf16.msra.mxu0 %v518
        %544 = vmatprep.subr.bf16.mxu0 0
        %545 = vmatpush1.bf16.msra.mxu0 %v517
        %546 = vmatprep.subr.bf16.mxu0 0
        %547 = vmatpush1.bf16.msra.mxu0 %v516
        %548 = vmatprep.subr.bf16.mxu0 0
        %549 = vmatpush2.bf16.msra.mxu0 0
        %550 = vmatprep.subr.bf16.mxu0 0
        %551 = vmatpush2.bf16.msra.mxu0 0
        %552 = vmatprep.subr.bf16.mxu0 0
        %553 = vmatpush2.bf16.msra.mxu0 0
        %554 = vmatprep.subr.bf16.mxu0 0
        %555 = vmatpush2.bf16.msra.mxu0 0
        %556 = vmatprep.subr.bf16.mxu0 0
        %557 = vmatpush2.bf16.msra.mxu0 0
        %558 = vmatprep.subr.bf16.mxu0 0
        %559 = vmatpush2.bf16.msra.mxu0 0
        %560 = vmatprep.subr.bf16.mxu0 0
        %561 = vmatpush2.bf16.msra.mxu0 0
        %562 = vmatprep.subr.bf16.mxu0 0
        %563 = vmatpush2.bf16.msra.mxu0 0
        %564 = vmatprep.mubr.bf16.mxu0 0
        %565 = vmatmul.mubr.bf16.gmra.mxu0 %v460
        %v566 = vpop.f32.mrf.mxu0
        %v567 = vadd.f32 %v482, %v566
        %v568 = vpop.f32.mrf.mxu0
        %v569 = vpop.f32.mrf.mxu0
        %v570 = vpop.f32.mrf.mxu0
        %571 = vdwg.mxu0
        %v572 = vrot.slane %v567, 4
        %v573 = vadd.f32 %v567, %v572
        %v574 = vrot.slane %v573, 2
        %v575 = vadd.f32 %v573, %v574
        %v576 = vrot.slane %v575, 1
        %v577 = vadd.f32 %v575, %v576
        %v578 = vrcp.pop 8.0
        %v579 = vmul.f32 %v577, %v578
        %vm580 = vcmp.ne.s32.totalorder %v448, 0
        %v581 = vsel %vm580, 1, 0
        %v582 = vcvt.s32.f32 %v581
        %vm583 = vcmp.ne.s32.totalorder %v448, 127
        %v584 = vsel %vm583, 1, 0
        %v585 = vcvt.s32.f32 %v584
        %586 = vrot.lane.b32.xlu0 %v579, 1
        %v587 = vpop.permute.xlu0 %586
        %v588 = vmul.f32 %v587, %v582
        %589 = vrot.lane.b32.xlu0 %v579, 127
        %v590 = vpop.permute.xlu0 %589
        %v591 = vmul.f32 %v590, %v585
        %s592 = sld [smem:[#allocation10]]
        %v593 = vstv %s592
        %v594 = vmul.f32 %v593, %v588
        %s595 = sld [smem:[#allocation10 + $0x1]]
        %v596 = vstv %s595
        %v597 = vmul.f32 %v596, %v579
        %v598 = vadd.f32 %v594, %v597
        %s599 = sld [smem:[#allocation10 + $0x2]]
        %v600 = vstv %s599
        %v601 = vmul.f32 %v600, %v591
        %v602 = vadd.f32 %v598, %v601
        %v603 = vxor.u32 %v602, 2147483648
        %v604 = vmul.f32 %v603, 1.442695
        %v605 = vpow.pop %v604
        %v606 = vadd.f32 %v605, 1.0
        %v607 = vrcp.pop %v606
        %v608 = vmul.f32 1.0, %v607
        %v609 = vlaneseq
        %v610 = vshrl.u32 %v609, 7
        %v611 = vsub.s32 0, %v610
        %v612 = vrot.slane %v608, %v611
        %v613 = vmul.f32 %v567, %v612
        %614 = vst [vmem:[%s349] sm:$0xff] %v613
        %s615 = sand.u32 %s187, 1
        %s616 = scalar_lea.sflag [#allocation4], %s615
        %s617 = sand.u32 %s187, 1
        %s618 = smul.addr %s617, 8
        %s619 = scalar_lea.vmem [#allocation12], %s618
        // Predicated region
        $region69: #{tpu_custom_call.1} parent=47 // pred_check
          %p620 = pneg %p197
        $region70: #{tpu_custom_call.1} parent=47 // pred_check_branch
          %622 = sbr.rel (%p620) target = $region72
        $region71: #{tpu_custom_call.1} parent=47 // pred_region
          %s624 = ssub.s32 128, 128
          %625 = vsyncadd %s616, %s624
          %s626 = smul.addr %s27, 128
          %s627 = scalar_lea.hbm %s7, %s626
          %s629 = sshll.u32 %s619, 4
          %s630 = int_to_ptr.vmem [resolvable:$true] %s629
          %632 = dma.vmem_to_hbm [thread:$0]  %s630, 128, %s627, %s616
        $region72: #{tpu_custom_call.1} parent=47 // pred_fallthru
          _
      $region48: #{tpu_custom_call.1} parent=5 // pred_fallthru
        _
      %p633 = scmp.le.s32.totalorder 2, %s22
      // Predicated region
      $region73: #{tpu_custom_call.1} parent=5 // pred_check
        %p634 = pneg %p633
      $region74: #{tpu_custom_call.1} parent=5 // pred_check_branch
        %636 = sbr.rel (%p634) target = $region76
      $region75: #{tpu_custom_call.1} parent=5 // pred_region
        %s637 = ssub.s32 %s22, 2
        // Predicated region
        $region77: #{tpu_custom_call.1} parent=75 // pred_check
          %p638 = pneg %p203
        $region78: #{tpu_custom_call.1} parent=75 // pred_check_branch
          %640 = sbr.rel (%p638) target = $region80
        $region79: #{tpu_custom_call.1} parent=75 // pred_region
          %s641 = sand.u32 %s188, 1
          %s642 = scalar_lea.sflag [#allocation4], %s641
          %s643 = sand.u32 %s188, 1
          %s644 = smul.addr %s643, 8
          %s645 = scalar_lea.vmem [#allocation12], %s644
          %646 = dma.done %s642, 128
        $region80: #{tpu_custom_call.1} parent=75 // pred_fallthru
          _
      $region76: #{tpu_custom_call.1} parent=5 // pred_fallthru
        _
    $region6: #{tpu_custom_call.1} parent=1 // loop_footer
      %s26 = sadd.s32 1, %s22
    $region7: #{tpu_custom_call.1} parent=1 // loop_footer_branch
      %21 = sbr.rel target = $region3
    $region8: #{tpu_custom_call.1} parent=1 // loop_exit
      _
    %647 = vsyncpa [#allocation3], 1
    %s648 = scalar_lea.sflag [#allocation3], 1
    %649 = vsyncpa %s648, 1
    %650 = vsyncpa [#allocation7], 1
    %651 = vsyncpa [#allocation4], 1
    %s652 = scalar_lea.sflag [#allocation4], 1
    %653 = vsyncpa %s652, 1
    %654 = vsyncpa [#allocation5], 1
    %s655 = scalar_lea.sflag [#allocation5], 1
    %656 = vsyncpa %s655, 1
    %657 = vsyncpa [#allocation11], 1

// kernel: tpu_custom_call.1
$region0: #{tpu_custom_call.1}
  #allocation0 [shape = 'u32[]', space=smem, size = 0x4, offset = 0x4, fixed_abs, tag = 'smem constant byte address 0x4 - core index']
  #allocation1 [shape = 'u32[144,128]{1,0:T(1,128)}', space=vmem, size = 0x12000, scoped, tag = 'internal scratch']
  %s0 = inlined_call_operand.hbm [shape: bf16[2,8,32], index: 0, kind: input, shape index: {}]
  %s1 = inlined_call_operand.hbm [shape: bf16[32,128], index: 1, kind: input, shape index: {}]
  %s2 = inlined_call_operand.vmem [shape: f32[1,128], index: 2, kind: input, shape index: {}]
  %s3 = inlined_call_operand.hbm [shape: bf16[128,128], index: 3, kind: input, shape index: {}]
  %s4 = inlined_call_operand.vmem [shape: f32[1,128], index: 4, kind: input, shape index: {}]
  %s5 = inlined_call_operand.vmem [shape: f32[3], index: 5, kind: input, shape index: {}]
  %s6 = inlined_call_operand.vmem [shape: f32[3], index: 6, kind: input, shape index: {}]
  %s7 = inlined_call_operand.hbm [shape: f32[2,8,128], index: 7, kind: output, shape index: {}]
  %s8 = sld [smem:[#allocation0]]
  $region81: #{tpu_custom_call.1} parent=0
    _
  %s10 = ssub.s32 1, %s8
  %s11 = scalar_select 0, %s10, %s8
  $region1: #{tpu_custom_call.1} parent=0
    #allocation2 [shape = 'u8[4096]{0}', space=vmem, size = 0x1000, scoped, tag = 'input window, operand 0']
    #allocation3 [shape = 's32[2]{0}', space=sflag, size = 0x8, scoped, tag = 'scoped memory for tpu_custom_call.1']
    #allocation4 [shape = 's32[2]{0}', space=sflag, size = 0x8, scoped, tag = 'scoped memory for tpu_custom_call.1']
    #allocation5 [shape = 's32[2]{0}', space=sflag, size = 0x8, scoped, tag = 'scoped memory for tpu_custom_call.1']
    #allocation6 [shape = 'u8[8192]{0}', space=vmem, size = 0x2000, scoped, tag = 'input window, operand 1, single buffered']
    #allocation7 [shape = 's32[1]{0}', space=sflag, size = 0x4, scoped, tag = 'scoped memory for tpu_custom_call.1']
    #allocation8 [shape = 'u8[32768]{0}', space=vmem, size = 0x8000, scoped, tag = 'input window, operand 3, single buffered']
    #allocation9 [shape = 'u8[512]{0}', space=smem, size = 0x200, scoped, tag = 'input window, operand 5, single buffered']
    #allocation10 [shape = 'u8[512]{0}', space=smem, size = 0x200, scoped, tag = 'input window, operand 6, single buffered']
    #allocation11 [shape = 's32[1]{0}', space=sflag, size = 0x4, scoped, tag = 'scoped memory for tpu_custom_call.1']
    #allocation12 [shape = 'u8[8192]{0}', space=vmem, size = 0x2000, scoped, tag = 'output window, operand 0']
    %12 = vsyncpa [#allocation3], 0
    %s13 = scalar_lea.sflag [#allocation3], 1
    %14 = vsyncpa %s13, 0
    %15 = vsyncpa [#allocation7], 0
    %16 = vsyncpa [#allocation5], 0
    %17 = vsyncpa [#allocation11], 0
    %18 = vsyncpa [#allocation4], 0
    %s19 = scalar_lea.sflag [#allocation4], 1
    %20 = vsyncpa %s19, 0
    loop: start=0, step=1, limit=4
    $region2: #{tpu_custom_call.1} parent=1 // loop_pre_header
      _
    $region3: #{tpu_custom_call.1} parent=1 // loop_header
      %s22 = sphi 0, %s26
      %p23 = scmp.ge.s32.totalorder %s22, 4
      %s32 = sphi 0, %s34
      %s35 = sphi 0, %s32
      %s36 = sphi 0, %s35
      %s52 = sphi 0, %s36
      %s56 = sphi 0, %s56
      %s58 = sphi 0, %s56
      %s59 = sphi 0, %s58
      %s73 = sphi 0, %s59
      %s77 = sphi 0, %s77
      %s79 = sphi 0, %s77
      %s80 = sphi 0, %s79
      %s94 = sphi 0, %s80
      %s98 = sphi 0, %s98
      %s100 = sphi 0, %s98
      %s101 = sphi 0, %s100
      %s115 = sphi 0, %s101
      %s119 = sphi 0, %s119
      %s121 = sphi 0, %s119
      %s122 = sphi 0, %s121
      %s136 = sphi 0, %s122
      %s140 = sphi 0, %s140
      %s142 = sphi 0, %s140
      %s143 = sphi 0, %s142
      %s157 = sphi 0, %s143
      %s161 = sphi 0, %s161
      %s163 = sphi 0, %s161
      %s164 = sphi 0, %s163
      %s178 = sphi 0, %s164
      %s184 = sphi 0, %s186
      %s187 = sphi 0, %s184
      %s188 = sphi 0, %s187
      %s204 = sphi 0, %s188
    $region4: #{tpu_custom_call.1} parent=1 // loop_header_branch
      %25 = sbr.rel (%p23) target = $region8
    $region5: #{tpu_custom_call.1} parent=1 // loop_body
      %s27 = ssub.s32 %s22, 1
      %s28 = ssub.s32 %s22, 2
      %s29 = sadd.s32 %s22, 1
      %s30 = ssub.s32 %s22, %s29
      %p31 = scmp.eq.s32.totalorder %s30, 0
      %s33 = sadd.s32 %s32, 1
      %s34 = scalar_select %p31, %s32, %s33
      %p37 = pneg %p31
      %p38 = scmp.eq.s32.totalorder %s22, 1
      %p39 = por %p37, %p38
      %p40 = scmp.ne.s32.totalorder %s32, %s35
      %p41 = scmp.eq.s32.totalorder %s22, 0
      %p42 = por %p40, %p41
      %p43 = scmp.ne.s32.totalorder %s32, %s35
      %p44 = scmp.eq.s32.totalorder %s27, 1
      %p45 = por %p43, %p44
      %p46 = scmp.ne.s32.totalorder %s35, %s36
      %p47 = scmp.eq.s32.totalorder %s27, 0
      %p48 = por %p46, %p47
      %p49 = scmp.ne.s32.totalorder %s35, %s36
      %p50 = scmp.eq.s32.totalorder %s28, 1
      %p51 = por %p49, %p50
      %p53 = scmp.ne.s32.totalorder %s36, %s52
      %p54 = scmp.eq.s32.totalorder %s28, 0
      %p55 = por %p53, %p54
      %s57 = sadd.s32 %s56, 1
      %p60 = scmp.eq.s32.totalorder %s22, 1
      %p61 = scmp.ne.s32.totalorder %s56, %s58
      %p62 = scmp.eq.s32.totalorder %s22, 0
      %p63 = por %p61, %p62
      %p64 = scmp.ne.s32.totalorder %s56, %s58
      %p65 = scmp.eq.s32.totalorder %s27, 1
      %p66 = por %p64, %p65
      %p67 = scmp.ne.s32.totalorder %s58, %s59
      %p68 = scmp.eq.s32.totalorder %s27, 0
      %p69 = por %p67, %p68
      %p70 = scmp.ne.s32.totalorder %s58, %s59
      %p71 = scmp.eq.s32.totalorder %s28, 1
      %p72 = por %p70, %p71
      %p74 = scmp.ne.s32.totalorder %s59, %s73
      %p75 = scmp.eq.s32.totalorder %s28, 0
      %p76 = por %p74, %p75
      %s78 = sadd.s32 %s77, 1
      %p81 = scmp.eq.s32.totalorder %s22, 1
      %p82 = scmp.ne.s32.totalorder %s77, %s79
      %p83 = scmp.eq.s32.totalorder %s22, 0
      %p84 = por %p82, %p83
      %p85 = scmp.ne.s32.totalorder %s77, %s79
      %p86 = scmp.eq.s32.totalorder %s27, 1
      %p87 = por %p85, %p86
      %p88 = scmp.ne.s32.totalorder %s79, %s80
      %p89 = scmp.eq.s32.totalorder %s27, 0
      %p90 = por %p88, %p89
      %p91 = scmp.ne.s32.totalorder %s79, %s80
      %p92 = scmp.eq.s32.totalorder %s28, 1
      %p93 = por %p91, %p92
      %p95 = scmp.ne.s32.totalorder %s80, %s94
      %p96 = scmp.eq.s32.totalorder %s28, 0
      %p97 = por %p95, %p96
      %s99 = sadd.s32 %s98, 1
      %p102 = scmp.eq.s32.totalorder %s22, 1
      %p103 = scmp.ne.s32.totalorder %s98, %s100
      %p104 = scmp.eq.s32.totalorder %s22, 0
      %p105 = por %p103, %p104
      %p106 = scmp.ne.s32.totalorder %s98, %s100
      %p107 = scmp.eq.s32.totalorder %s27, 1
      %p108 = por %p106, %p107
      %p109 = scmp.ne.s32.totalorder %s100, %s101
      %p110 = scmp.eq.s32.totalorder %s27, 0
      %p111 = por %p109, %p110
      %p112 = scmp.ne.s32.totalorder %s100, %s101
      %p113 = scmp.eq.s32.totalorder %s28, 1
      %p114 = por %p112, %p113
      %p116 = scmp.ne.s32.totalorder %s101, %s115
      %p117 = scmp.eq.s32.totalorder %s28, 0
      %p118 = por %p116, %p117
      %s120 = sadd.s32 %s119, 1
      %p123 = scmp.eq.s32.totalorder %s22, 1
      %p124 = scmp.ne.s32.totalorder %s119, %s121
      %p125 = scmp.eq.s32.totalorder %s22, 0
      %p126 = por %p124, %p125
      %p127 = scmp.ne.s32.totalorder %s119, %s121
      %p128 = scmp.eq.s32.totalorder %s27, 1
      %p129 = por %p127, %p128
      %p130 = scmp.ne.s32.totalorder %s121, %s122
      %p131 = scmp.eq.s32.totalorder %s27, 0
      %p132 = por %p130, %p131
      %p133 = scmp.ne.s32.totalorder %s121, %s122
      %p134 = scmp.eq.s32.totalorder %s28, 1
      %p135 = por %p133, %p134
      %p137 = scmp.ne.s32.totalorder %s122, %s136
      %p138 = scmp.eq.s32.totalorder %s28, 0
      %p139 = por %p137, %p138
      %s141 = sadd.s32 %s140, 1
      %p144 = scmp.eq.s32.totalorder %s22, 1
      %p145 = scmp.ne.s32.totalorder %s140, %s142
      %p146 = scmp.eq.s32.totalorder %s22, 0
      %p147 = por %p145, %p146
      %p148 = scmp.ne.s32.totalorder %s140, %s142
      %p149 = scmp.eq.s32.totalorder %s27, 1
      %p150 = por %p148, %p149
      %p151 = scmp.ne.s32.totalorder %s142, %s143
      %p152 = scmp.eq.s32.totalorder %s27, 0
      %p153 = por %p151, %p152
      %p154 = scmp.ne.s32.totalorder %s142, %s143
      %p155 = scmp.eq.s32.totalorder %s28, 1
      %p156 = por %p154, %p155
      %p158 = scmp.ne.s32.totalorder %s143, %s157
      %p159 = scmp.eq.s32.totalorder %s28, 0
      %p160 = por %p158, %p159
      %s162 = sadd.s32 %s161, 1
      %p165 = scmp.eq.s32.totalorder %s22, 1
      %p166 = scmp.ne.s32.totalorder %s161, %s163
      %p167 = scmp.eq.s32.totalorder %s22, 0
      %p168 = por %p166, %p167
      %p169 = scmp.ne.s32.totalorder %s161, %s163
      %p170 = scmp.eq.s32.totalorder %s27, 1
      %p171 = por %p169, %p170
      %p172 = scmp.ne.s32.totalorder %s163, %s164
      %p173 = scmp.eq.s32.totalorder %s27, 0
      %p174 = por %p172, %p173
      %p175 = scmp.ne.s32.totalorder %s163, %s164
      %p176 = scmp.eq.s32.totalorder %s28, 1
      %p177 = por %p175, %p176
      %p179 = scmp.ne.s32.totalorder %s164, %s178
      %p180 = scmp.eq.s32.totalorder %s28, 0
      %p181 = por %p179, %p180
      %s182 = ssub.s32 %s22, %s29
      %p183 = scmp.eq.s32.totalorder %s182, 0
      %s185 = sadd.s32 %s184, 1
      %s186 = scalar_select %p183, %s184, %s185
      %p189 = pneg %p183
      %p190 = scmp.eq.s32.totalorder %s22, 1
      %p191 = por %p189, %p190
      %p192 = scmp.ne.s32.totalorder %s184, %s187
      %p193 = scmp.eq.s32.totalorder %s22, 0
      %p194 = por %p192, %p193
      %p195 = scmp.ne.s32.totalorder %s184, %s187
      %p196 = scmp.eq.s32.totalorder %s27, 1
      %p197 = por %p195, %p196
      %p198 = scmp.ne.s32.totalorder %s187, %s188
      %p199 = scmp.eq.s32.totalorder %s27, 0
      %p200 = por %p198, %p199
      %p201 = scmp.ne.s32.totalorder %s187, %s188
      %p202 = scmp.eq.s32.totalorder %s28, 1
      %p203 = por %p201, %p202
      %p205 = scmp.ne.s32.totalorder %s188, %s204
      %p206 = scmp.eq.s32.totalorder %s28, 0
      %p207 = por %p205, %p206
      %p208 = scmp.le.s32.totalorder 1, %s22
      %p209 = scmp.lt.s32.totalorder %s22, 3
      %p210 = pnand %p208, %p209
      %p211 = pneg %p210
      // Predicated region
      $region9: #{tpu_custom_call.1} parent=5 // pred_check
        _
      $region10: #{tpu_custom_call.1} parent=5 // pred_check_branch
        %213 = sbr.rel (%p210) target = $region12
      $region11: #{tpu_custom_call.1} parent=5 // pred_region
        %s214 = ssub.s32 %s22, 1
        // Predicated region
        $region13: #{tpu_custom_call.1} parent=11 // pred_check
          %p215 = pneg %p69
        $region14: #{tpu_custom_call.1} parent=11 // pred_check_branch
          %217 = sbr.rel (%p215) target = $region16
        $region15: #{tpu_custom_call.1} parent=11 // pred_region
          %s219 = ssub.s32 256, 256
          %220 = vsyncadd [#allocation7], %s219
          %s221 = sshll.u32 [#allocation6], 4
          %s222 = int_to_ptr.vmem [resolvable:$true] %s221
          %227 = dma.hbm_to_vmem [thread:$0]  %s1, 256, %s222, [#allocation7], 64, 64, 4
        $region16: #{tpu_custom_call.1} parent=11 // pred_fallthru
          _
        // Predicated region
        $region17: #{tpu_custom_call.1} parent=11 // pred_check
          %p228 = pneg %p90
        $region18: #{tpu_custom_call.1} parent=11 // pred_check_branch
          %230 = sbr.rel (%p228) target = $region20
        $region19: #{tpu_custom_call.1} parent=11 // pred_region
          _
        $region20: #{tpu_custom_call.1} parent=11 // pred_fallthru
          _
        // Predicated region
        $region21: #{tpu_custom_call.1} parent=11 // pred_check
          %p231 = pneg %p111
        $region22: #{tpu_custom_call.1} parent=11 // pred_check_branch
          %233 = sbr.rel (%p231) target = $region24
        $region23: #{tpu_custom_call.1} parent=11 // pred_region
          %s235 = ssub.s32 1024, 1024
          %236 = vsyncadd [#allocation7], %s235
          %s237 = sshll.u32 [#allocation8], 4
          %s238 = int_to_ptr.vmem [resolvable:$true] %s237
          %243 = dma.hbm_to_vmem [thread:$0]  %s3, 1024, %s238, [#allocation7], 64, 64, 4
        $region24: #{tpu_custom_call.1} parent=11 // pred_fallthru
          _
        // Predicated region
        $region25: #{tpu_custom_call.1} parent=11 // pred_check
          %p244 = pneg %p132
        $region26: #{tpu_custom_call.1} parent=11 // pred_check_branch
          %246 = sbr.rel (%p244) target = $region28
        $region27: #{tpu_custom_call.1} parent=11 // pred_region
          _
        $region28: #{tpu_custom_call.1} parent=11 // pred_fallthru
          _
        // Predicated region
        $region29: #{tpu_custom_call.1} parent=11 // pred_check
          %p247 = pneg %p153
        $region30: #{tpu_custom_call.1} parent=11 // pred_check_branch
          %249 = sbr.rel (%p247) target = $region32
        $region31: #{tpu_custom_call.1} parent=11 // pred_region
          %s251 = ssub.s32 16, 16
          %252 = vsyncadd [#allocation5], %s251
          %s254 = sshll.u32 %s5, 4
          %s255 = int_to_ptr.vmem [resolvable:$true] %s254
          %257 = dma.vmem_to_smem %s255, 16, [#allocation9], [#allocation5]
        $region32: #{tpu_custom_call.1} parent=11 // pred_fallthru
          _
        // Predicated region
        $region33: #{tpu_custom_call.1} parent=11 // pred_check
          %p258 = pneg %p174
        $region34: #{tpu_custom_call.1} parent=11 // pred_check_branch
          %260 = sbr.rel (%p258) target = $region36
        $region35: #{tpu_custom_call.1} parent=11 // pred_region
          %s262 = ssub.s32 16, 16
          %263 = vsyncadd [#allocation11], %s262
          %s265 = sshll.u32 %s6, 4
          %s266 = int_to_ptr.vmem [resolvable:$true] %s265
          %268 = dma.vmem_to_smem %s266, 16, [#allocation10], [#allocation11]
        $region36: #{tpu_custom_call.1} parent=11 // pred_fallthru
          _
      $region12: #{tpu_custom_call.1} parent=5 // pred_fallthru
        _
      %p269 = scmp.lt.s32.totalorder %s22, 2
      // Predicated region
      $region37: #{tpu_custom_call.1} parent=5 // pred_check
        %p270 = pneg %p269
      $region38: #{tpu_custom_call.1} parent=5 // pred_check_branch
        %272 = sbr.rel (%p270) target = $region40
      $region39: #{tpu_custom_call.1} parent=5 // pred_region
        // Predicated region
        $region41: #{tpu_custom_call.1} parent=39 // pred_check
          %p273 = pneg %p42
        $region42: #{tpu_custom_call.1} parent=39 // pred_check_branch
          %275 = sbr.rel (%p273) target = $region44
        $region43: #{tpu_custom_call.1} parent=39 // pred_region
          %s276 = sand.u32 %s32, 1
          %s277 = scalar_lea.sflag [#allocation3], %s276
          %s278 = sand.u32 %s32, 1
          %s279 = smul.addr %s278, 4
          %s280 = scalar_lea.vmem [#allocation2], %s279
          %s282 = ssub.s32 64, 64
          %283 = vsyncadd %s277, %s282
          %s284 = smul.addr %s22, 64
          %s285 = scalar_lea.hbm %s0, %s284
          %s287 = sshll.u32 %s280, 4
          %s288 = int_to_ptr.vmem [resolvable:$true] %s287
          %290 = dma.hbm_to_vmem [thread:$0]  %s285, 64, %s288, %s277
        $region44: #{tpu_custom_call.1} parent=39 // pred_fallthru
          _
      $region40: #{tpu_custom_call.1} parent=5 // pred_fallthru
        _
      %p291 = scmp.le.s32.totalorder 1, %s22
      %p292 = scmp.lt.s32.totalorder %s22, 3
      %p293 = pnand %p291, %p292
      %p294 = pneg %p293
      // Predicated region
      $region45: #{tpu_custom_call.1} parent=5 // pred_check
        _
      $region46: #{tpu_custom_call.1} parent=5 // pred_check_branch
        %296 = sbr.rel (%p293) target = $region48
      $region47: #{tpu_custom_call.1} parent=5 // pred_region
        %s297 = ssub.s32 %s22, 1
        %s298 = sand.u32 %s35, 1
        %s299 = scalar_lea.sflag [#allocation3], %s298
        %s300 = sand.u32 %s35, 1
        %s301 = smul.addr %s300, 4
        %s302 = scalar_lea.vmem [#allocation2], %s301
        // Predicated region
        $region49: #{tpu_custom_call.1} parent=47 // pred_check
          %p303 = pneg %p48
        $region50: #{tpu_custom_call.1} parent=47 // pred_check_branch
          %305 = sbr.rel (%p303) target = $region52
        $region51: #{tpu_custom_call.1} parent=47 // pred_region
          %306 = dma.done %s299, 64
        $region52: #{tpu_custom_call.1} parent=47 // pred_fallthru
          _
        // Predicated region
        $region53: #{tpu_custom_call.1} parent=47 // pred_check
          %p307 = pneg %p69
        $region54: #{tpu_custom_call.1} parent=47 // pred_check_branch
          %309 = sbr.rel (%p307) target = $region56
        $region55: #{tpu_custom_call.1} parent=47 // pred_region
          %310 = dma.done [#allocation7], 256
        $region56: #{tpu_custom_call.1} parent=47 // pred_fallthru
          _
        // Predicated region
        $region57: #{tpu_custom_call.1} parent=47 // pred_check
          %p311 = pneg %p111
        $region58: #{tpu_custom_call.1} parent=47 // pred_check_branch
          %313 = sbr.rel (%p311) target = $region60
        $region59: #{tpu_custom_call.1} parent=47 // pred_region
          %314 = dma.done [#allocation7], 1024
        $region60: #{tpu_custom_call.1} parent=47 // pred_fallthru
          _
        // Predicated region
        $region61: #{tpu_custom_call.1} parent=47 // pred_check
          %p315 = pneg %p153
        $region62: #{tpu_custom_call.1} parent=47 // pred_check_branch
          %317 = sbr.rel (%p315) target = $region64
        $region63: #{tpu_custom_call.1} parent=47 // pred_region
          %318 = dma.done [#allocation5], 16
        $region64: #{tpu_custom_call.1} parent=47 // pred_fallthru
          _
        // Predicated region
        $region65: #{tpu_custom_call.1} parent=47 // pred_check
          %p319 = pneg %p174
        $region66: #{tpu_custom_call.1} parent=47 // pred_check_branch
          %321 = sbr.rel (%p319) target = $region68
        $region67: #{tpu_custom_call.1} parent=47 // pred_region
          %322 = dma.done [#allocation11], 16
        $region68: #{tpu_custom_call.1} parent=47 // pred_fallthru
          _
        %323 = sfence
        %s324 = sand.u32 %s35, 1
        %s325 = scalar_lea.sflag [#allocation3], %s324
        %s326 = sand.u32 %s35, 1
        %s327 = smul.addr %s326, 4
        %s328 = scalar_lea.vmem [#allocation2], %s327
        %p329 = pneg %p48
        %p330 = pneg %p45
        %p331 = pneg %p69
        %p332 = pneg %p66
        %p333 = pneg %p90
        %p334 = pneg %p87
        %p335 = pneg %p111
        %p336 = pneg %p108
        %p337 = pneg %p132
        %p338 = pneg %p129
        %p339 = pneg %p153
        %p340 = pneg %p150
        %p341 = pneg %p174
        %p342 = pneg %p171
        %p343 = pneg %p200
        %p344 = pneg %p197
        %s345 = sand.u32 %s187, 1
        %s346 = scalar_lea.sflag [#allocation4], %s345
        %s347 = sand.u32 %s187, 1
        %s348 = smul.addr %s347, 8
        %s349 = scalar_lea.vmem [#allocation12], %s348
        %v351 = vld [vmem:[%s302] sm:$0xf]
        %v352 = vld [vmem:[#allocation6] sm:$0xf]
        %v353 = vld [vmem:[#allocation6 + $0x4] sm:$0xf]
        %v354 = vld [vmem:[#allocation6 + $0x8] sm:$0xf]
        %v355 = vld [vmem:[#allocation6 + $0xc] sm:$0xf]
        %v356 = vld [vmem:[%s2] sm:$0x1]
        %v358 = vlaneseq
        %v359 = vshrl.u32 %v358, 7
        %v360 = vsub.s32 0, %v359
        %v361 = vrot.slane %v356, %v360
        %v367 = vunpack.c.l.b16 %v352
        %v368 = vunpack.c.l.b16 %v353
        %v369 = vunpack.c.l.b16 %v354
        %v370 = vunpack.c.l.b16 %v355
        %v371 = vpack.c.b16 %v368, %v367
        %v372 = vpack.c.b16 %v370, %v369
        %vm375 = vcmask 261120
        %v377 = vsel %vm375, %v351, 0
        %379 = vmatprep.subr.bf16.mxu0 0
        %380 = vmatpush1.bf16.msra.mxu0 0
        %381 = vmatprep.subr.bf16.mxu0 0
        %382 = vmatpush1.bf16.msra.mxu0 0
        %383 = vmatprep.subr.bf16.mxu0 0
        %384 = vmatpush1.bf16.msra.mxu0 0
        %385 = vmatprep.subr.bf16.mxu0 0
        %386 = vmatpush1.bf16.msra.mxu0 0
        %387 = vmatprep.subr.bf16.mxu0 0
        %388 = vmatpush1.bf16.msra.mxu0 0
        %389 = vmatprep.subr.bf16.mxu0 0
        %390 = vmatpush1.bf16.msra.mxu0 0
        %391 = vmatprep.subr.bf16.mxu0 0
        %392 = vmatpush1.bf16.msra.mxu0 %v372
        %393 = vmatprep.subr.bf16.mxu0 0
        %394 = vmatpush1.bf16.msra.mxu0 %v371
        %395 = vmatprep.subr.bf16.mxu0 0
        %396 = vmatpush2.bf16.msra.mxu0 0
        %397 = vmatprep.subr.bf16.mxu0 0
        %398 = vmatpush2.bf16.msra.mxu0 0
        %399 = vmatprep.subr.bf16.mxu0 0
        %400 = vmatpush2.bf16.msra.mxu0 0
        %401 = vmatprep.subr.bf16.mxu0 0
        %402 = vmatpush2.bf16.msra.mxu0 0
        %403 = vmatprep.subr.bf16.mxu0 0
        %404 = vmatpush2.bf16.msra.mxu0 0
        %405 = vmatprep.subr.bf16.mxu0 0
        %406 = vmatpush2.bf16.msra.mxu0 0
        %407 = vmatprep.subr.bf16.mxu0 0
        %408 = vmatpush2.bf16.msra.mxu0 0
        %409 = vmatprep.subr.bf16.mxu0 0
        %410 = vmatpush2.bf16.msra.mxu0 0
        %411 = vmatprep.mubr.bf16.mxu0 0
        %412 = vmatmul.mubr.bf16.gmra.mxu0 %v377
        %v413 = vpop.f32.mrf.mxu0
        %v414 = vadd.f32 %v361, %v413
        %v415 = vpop.f32.mrf.mxu0
        %v416 = vpop.f32.mrf.mxu0
        %v417 = vpop.f32.mrf.mxu0
        %418 = vdwg.mxu0
        %v419 = vmul.f32 %v414, 0.5
        %v420 = vmul.f32 %v414, 0.70710677
        %v421 = verf.f32.pop %v420
        %v422 = vadd.f32 %v421, 1.0
        %v423 = vmul.f32 %v419, %v422
        %v424 = vlaneseq
        %v425 = vshrl.u32 %v424, 7
        %vm426 = vcmp.ne.s32.totalorder %v425, 0
        %v427 = vsel %vm426, 1, 0
        %v428 = vcvt.s32.f32 %v427
        %vm429 = vcmp.ne.s32.totalorder %v425, 7
        %v430 = vsel %vm429, 1, 0
        %v431 = vcvt.s32.f32 %v430
        %v432 = vrot.slane %v423, 7
        %v433 = vmul.f32 %v432, %v428
        %v434 = vrot.slane %v423, 1
        %v435 = vmul.f32 %v434, %v431
        %s436 = sld [smem:[#allocation9]]
        %v437 = vstv %s436
        %v438 = vmul.f32 %v437, %v433
        %s439 = sld [smem:[#allocation9 + $0x1]]
        %v440 = vstv %s439
        %v441 = vmul.f32 %v440, %v423
        %v442 = vadd.f32 %v438, %v441
        %s443 = sld [smem:[#allocation9 + $0x2]]
        %v444 = vstv %s443
        %v445 = vmul.f32 %v444, %v435
        %v446 = vadd.f32 %v442, %v445
        %v447 = vlaneseq
        %v448 = vand.u32 %v447, 127
        %vm449 = vcmp.eq.s32.totalorder %v448, 0
        %v450 = vsel %vm449, 1, 0
        %v451 = vcvt.s32.f32 %v450
        %v452 = vsub.f32 %v446, %v423
        %v453 = vmul.f32 %v451, %v452
        %v454 = vadd.f32 %v423, %v453
        %v455 = vmul.f32 %v454, 0.5
        %v456 = vmul.f32 %v454, 0.70710677
        %v457 = verf.f32.pop %v456
        %v458 = vadd.f32 %v457, 1.0
        %v459 = vmul.f32 %v455, %v458
        %v460 = vpack.c.bf16 %v459, %v459
        %v461 = vld [vmem:[#allocation8] sm:$0xf]
        %v462 = vld [vmem:[#allocation8 + $0x4] sm:$0xf]
        %v463 = vld [vmem:[#allocation8 + $0x8] sm:$0xf]
        %v464 = vld [vmem:[#allocation8 + $0xc] sm:$0xf]
        %v465 = vld [vmem:[#allocation8 + $0x10] sm:$0xf]
        %v466 = vld [vmem:[#allocation8 + $0x14] sm:$0xf]
        %v467 = vld [vmem:[#allocation8 + $0x18] sm:$0xf]
        %v468 = vld [vmem:[#allocation8 + $0x1c] sm:$0xf]
        %v469 = vld [vmem:[#allocation8 + $0x20] sm:$0xf]
        %v470 = vld [vmem:[#allocation8 + $0x24] sm:$0xf]
        %v471 = vld [vmem:[#allocation8 + $0x28] sm:$0xf]
        %v472 = vld [vmem:[#allocation8 + $0x2c] sm:$0xf]
        %v473 = vld [vmem:[#allocation8 + $0x30] sm:$0xf]
        %v474 = vld [vmem:[#allocation8 + $0x34] sm:$0xf]
        %v475 = vld [vmem:[#allocation8 + $0x38] sm:$0xf]
        %v476 = vld [vmem:[#allocation8 + $0x3c] sm:$0xf]
        %v477 = vld [vmem:[%s4] sm:$0x1]
        %v479 = vlaneseq
        %v480 = vshrl.u32 %v479, 7
        %v481 = vsub.s32 0, %v480
        %v482 = vrot.slane %v477, %v481
        %v500 = vunpack.c.l.b16 %v461
        %v501 = vunpack.c.l.b16 %v462
        %v502 = vunpack.c.l.b16 %v463
        %v503 = vunpack.c.l.b16 %v464
        %v504 = vunpack.c.l.b16 %v465
        %v505 = vunpack.c.l.b16 %v466
        %v506 = vunpack.c.l.b16 %v467
        %v507 = vunpack.c.l.b16 %v468
        %v508 = vunpack.c.l.b16 %v469
        %v509 = vunpack.c.l.b16 %v470
        %v510 = vunpack.c.l.b16 %v471
        %v511 = vunpack.c.l.b16 %v472
        %v512 = vunpack.c.l.b16 %v473
        %v513 = vunpack.c.l.b16 %v474
        %v514 = vunpack.c.l.b16 %v475
        %v515 = vunpack.c.l.b16 %v476
        %v516 = vpack.c.b16 %v501, %v500
        %v517 = vpack.c.b16 %v503, %v502
        %v518 = vpack.c.b16 %v505, %v504
        %v519 = vpack.c.b16 %v507, %v506
        %v520 = vpack.c.b16 %v509, %v508
        %v521 = vpack.c.b16 %v511, %v510
        %v522 = vpack.c.b16 %v513, %v512
        %v523 = vpack.c.b16 %v515, %v514
        %532 = vmatprep.subr.bf16.mxu0 0
        %533 = vmatpush1.bf16.msra.mxu0 %v523
        %534 = vmatprep.subr.bf16.mxu0 0
        %535 = vmatpush1.bf16.msra.mxu0 %v522
        %536 = vmatprep.subr.bf16.mxu0 0
        %537 = vmatpush1.bf16.msra.mxu0 %v521
        %538 = vmatprep.subr.bf16.mxu0 0
        %539 = vmatpush1.bf16.msra.mxu0 %v520
        %540 = vmatprep.subr.bf16.mxu0 0
        %541 = vmatpush1.bf16.msra.mxu0 %v519
        %542 = vmatprep.subr.bf16.mxu0 0
        %543 = vmatpush1.bf16.msra.mxu0 %v518
        %544 = vmatprep.subr.bf16.mxu0 0
        %545 = vmatpush1.bf16.msra.mxu0 %v517
        %546 = vmatprep.subr.bf16.mxu0 0
        %547 = vmatpush1.bf16.msra.mxu0 %v516
        %548 = vmatprep.subr.bf16.mxu0 0
        %549 = vmatpush2.bf16.msra.mxu0 0
        %550 = vmatprep.subr.bf16.mxu0 0
        %551 = vmatpush2.bf16.msra.mxu0 0
        %552 = vmatprep.subr.bf16.mxu0 0
        %553 = vmatpush2.bf16.msra.mxu0 0
        %554 = vmatprep.subr.bf16.mxu0 0
        %555 = vmatpush2.bf16.msra.mxu0 0
        %556 = vmatprep.subr.bf16.mxu0 0
        %557 = vmatpush2.bf16.msra.mxu0 0
        %558 = vmatprep.subr.bf16.mxu0 0
        %559 = vmatpush2.bf16.msra.mxu0 0
        %560 = vmatprep.subr.bf16.mxu0 0
        %561 = vmatpush2.bf16.msra.mxu0 0
        %562 = vmatprep.subr.bf16.mxu0 0
        %563 = vmatpush2.bf16.msra.mxu0 0
        %564 = vmatprep.mubr.bf16.mxu0 0
        %565 = vmatmul.mubr.bf16.gmra.mxu0 %v460
        %v566 = vpop.f32.mrf.mxu0
        %v567 = vadd.f32 %v482, %v566
        %v568 = vpop.f32.mrf.mxu0
        %v569 = vpop.f32.mrf.mxu0
        %v570 = vpop.f32.mrf.mxu0
        %571 = vdwg.mxu0
        %v572 = vrot.slane %v567, 4
        %v573 = vadd.f32 %v567, %v572
        %v574 = vrot.slane %v573, 2
        %v575 = vadd.f32 %v573, %v574
        %v576 = vrot.slane %v575, 1
        %v577 = vadd.f32 %v575, %v576
        %v578 = vrcp.pop 8.0
        %v579 = vmul.f32 %v577, %v578
        %vm580 = vcmp.ne.s32.totalorder %v448, 0
        %v581 = vsel %vm580, 1, 0
        %v582 = vcvt.s32.f32 %v581
        %vm583 = vcmp.ne.s32.totalorder %v448, 127
        %v584 = vsel %vm583, 1, 0
        %v585 = vcvt.s32.f32 %v584
        %586 = vrot.lane.b32.xlu0 %v579, 1
        %v587 = vpop.permute.xlu0 %586
        %v588 = vmul.f32 %v587, %v582
        %589 = vrot.lane.b32.xlu0 %v579, 127
        %v590 = vpop.permute.xlu0 %589
        %v591 = vmul.f32 %v590, %v585
        %s592 = sld [smem:[#allocation10]]
        %v593 = vstv %s592
        %v594 = vmul.f32 %v593, %v588
        %s595 = sld [smem:[#allocation10 + $0x1]]
        %v596 = vstv %s595
        %v597 = vmul.f32 %v596, %v579
        %v598 = vadd.f32 %v594, %v597
        %s599 = sld [smem:[#allocation10 + $0x2]]
        %v600 = vstv %s599
        %v601 = vmul.f32 %v600, %v591
        %v602 = vadd.f32 %v598, %v601
        %v603 = vxor.u32 %v602, 2147483648
        %v604 = vmul.f32 %v603, 1.442695
        %v605 = vpow.pop %v604
        %v606 = vadd.f32 %v605, 1.0
        %v607 = vrcp.pop %v606
        %v608 = vmul.f32 1.0, %v607
        %v609 = vlaneseq
        %v610 = vshrl.u32 %v609, 7
        %v611 = vsub.s32 0, %v610
        %v612 = vrot.slane %v608, %v611
        %v613 = vmul.f32 %v567, %v612
        %614 = vst [vmem:[%s349] sm:$0xff] %v613
        %s615 = sand.u32 %s187, 1
        %s616 = scalar_lea.sflag [#allocation4], %s615
        %s617 = sand.u32 %s187, 1
        %s618 = smul.addr %s617, 8
        %s619 = scalar_lea.vmem [#allocation12], %s618
        // Predicated region
        $region69: #{tpu_custom_call.1} parent=47 // pred_check
          %p620 = pneg %p197
        $region70: #{tpu_custom_call.1} parent=47 // pred_check_branch
          %622 = sbr.rel (%p620) target = $region72
        $region71: #{tpu_custom_call.1} parent=47 // pred_region
          %s624 = ssub.s32 128, 128
          %625 = vsyncadd %s616, %s624
          %s626 = smul.addr %s27, 128
          %s627 = scalar_lea.hbm %s7, %s626
          %s629 = sshll.u32 %s619, 4
          %s630 = int_to_ptr.vmem [resolvable:$true] %s629
          %632 = dma.vmem_to_hbm [thread:$0]  %s630, 128, %s627, %s616
        $region72: #{tpu_custom_call.1} parent=47 // pred_fallthru
          _
      $region48: #{tpu_custom_call.1} parent=5 // pred_fallthru
        _
      %p633 = scmp.le.s32.totalorder 2, %s22
      // Predicated region
      $region73: #{tpu_custom_call.1} parent=5 // pred_check
        %p634 = pneg %p633
      $region74: #{tpu_custom_call.1} parent=5 // pred_check_branch
        %636 = sbr.rel (%p634) target = $region76
      $region75: #{tpu_custom_call.1} parent=5 // pred_region
        %s637 = ssub.s32 %s22, 2
        // Predicated region
        $region77: #{tpu_custom_call.1} parent=75 // pred_check
          %p638 = pneg %p203
        $region78: #{tpu_custom_call.1} parent=75 // pred_check_branch
          %640 = sbr.rel (%p638) target = $region80
        $region79: #{tpu_custom_call.1} parent=75 // pred_region
          %s641 = sand.u32 %s188, 1
          %s642 = scalar_lea.sflag [#allocation4], %s641
          %s643 = sand.u32 %s188, 1
          %s644 = smul.addr %s643, 8
          %s645 = scalar_lea.vmem [#allocation12], %s644
          %646 = dma.done %s642, 128
        $region80: #{tpu_custom_call.1} parent=75 // pred_fallthru
          _
      $region76: #{tpu_custom_call.1} parent=5 // pred_fallthru
        _
    $region6: #{tpu_custom_call.1} parent=1 // loop_footer
      %s26 = sadd.s32 1, %s22
    $region7: #{tpu_custom_call.1} parent=1 // loop_footer_branch
      %21 = sbr.rel target = $region3
    $region8: #{tpu_custom_call.1} parent=1 // loop_exit
      _
    %647 = vsyncpa [#allocation3], 1
    %s648 = scalar_lea.sflag [#allocation3], 1
    %649 = vsyncpa %s648, 1
    %650 = vsyncpa [#allocation7], 1
    %651 = vsyncpa [#allocation4], 1
    %s652 = scalar_lea.sflag [#allocation4], 1
    %653 = vsyncpa %s652, 1
    %654 = vsyncpa [#allocation5], 1
    %s655 = scalar_lea.sflag [#allocation5], 1
    %656 = vsyncpa %s655, 1
    %657 = vsyncpa [#allocation11], 1

</llo_original>
